<compile_context>
chip_gen: v5e
topology: v5e:2x2
jax: 0.10.0
libtpu: 0.0.40
codegen_flags: <defaults>
</compile_context>

<pallas_src>
import functools

import jax
import jax.numpy as jnp
from jax import lax
from jax.experimental import pallas as pl
from jax.experimental.pallas import tpu as pltpu

LN_EPS = 1e-5  # torch.nn.LayerNorm default


# ----------------------------------------------------------------------------
# helpers
# ----------------------------------------------------------------------------
def _round_up(n, m):
    return ((n + m - 1) // m) * m


def _pad2(a, rows, cols):
    return jnp.pad(a, ((0, rows - a.shape[0]), (0, cols - a.shape[1])))


def _pick_tile(n, target):
    """Row-tile size: multiple of 128, <= round_up(n,128), near `target`, and
    keeping >= 2 tiles along the axis whenever the data spans >= 2 aligned
    tiles (so the 'parallel' grid axis can shard across v7x's 2 TensorCores)."""
    n128 = _round_up(max(n, 1), 128)
    t = min(_round_up(target, 128), n128)
    if n128 >= 256 and t >= n:          # grid would collapse to a single tile
        t = _round_up(pl.cdiv(n128, 2), 128)
    return t


def _layer_norm(z, gamma, beta):
    """Plain LayerNorm over the last dim (pure-JAX reference)."""
    mu = jnp.mean(z, axis=-1, keepdims=True)
    var = jnp.mean(jnp.square(z - mu), axis=-1, keepdims=True)
    return (z - mu) * lax.rsqrt(var + LN_EPS) * gamma + beta


def _layer_norm_padded(z, gamma, beta, d_true, d_pad):
    """LayerNorm over the true feature dim when the lane dim is zero-padded.

    Padded lanes of `z` are exactly 0 (weights/biases zero-padded), so sums over
    all lanes equal sums over the true lanes; only the centered term must be
    masked so padded lanes don't pollute the variance. The mask is a single
    (1, d_pad) lane row (broadcast), built only when padding exists.
    """
    inv_d = 1.0 / d_true                      # python constant, hoisted
    mu = jnp.sum(z, axis=-1, keepdims=True) * inv_d
    diff = z - mu
    if d_true != d_pad:
        lane = lax.broadcasted_iota(jnp.int32, (1, d_pad), 1)
        diff = jnp.where(lane < d_true, diff, 0.0)
    var = jnp.sum(diff * diff, axis=-1, keepdims=True) * inv_d
    return diff * lax.rsqrt(var + LN_EPS) * gamma + beta


# ----------------------------------------------------------------------------
# kernels
# ----------------------------------------------------------------------------
def _edge_kernel(d_true, d_pad,
                 x_ref, ht_ref, y0_ref, dein_ref, emask_ref,
                 wea_ref, wvweb_ref, bef_ref, bvweb_ref,
                 lne_g_ref, lne_b_ref,
                 yt_ref, yout_ref,
                 acc_ref, base_ref):
    """Edge path. grid = (edge-row tiles [parallel], vertex tiles [reduce]).

    acc accumulates S_e = sum_k Ht_k @ X_k  (== H^T X, streamed over vertices);
    base (computed once at k==0, hidden under the pipelined reduction) holds
    Y0 @ Wea + bef. At the last reduction step:
      Yt    = base + (D_e^{-1} S_e) @ (Wv Web) + 1[deg_e>0] * (bv Web)
      Y_out = relu(LayerNorm_e(Yt))
    """
    k = pl.program_id(1)

    @pl.when(k == 0)
    def _():
        acc_ref[...] = jnp.zeros_like(acc_ref)
        base_ref[...] = (jnp.dot(y0_ref[...], wea_ref[...],
                                 preferred_element_type=jnp.float32)
                         + bef_ref[...])

    # int8 H tile -> bf16 just before the MXU (storage-only bandwidth trick).
    acc_ref[...] += jnp.dot(ht_ref[...].astype(jnp.bfloat16), x_ref[...],
                            preferred_element_type=jnp.float32)

    @pl.when(k == pl.num_programs(1) - 1)
    def _():
        # bf16 cast of the normalized aggregate: fine at bf16-level tolerance;
        # keep f32 here if very large hyperedge degrees demand it.
        s_e = (acc_ref[...] * dein_ref[...]).astype(jnp.bfloat16)
        yt = (base_ref[...]
              + jnp.dot(s_e, wvweb_ref[...], preferred_element_type=jnp.float32)
              + emask_ref[...] * bvweb_ref[...])
        yt_ref[...] = yt.astype(yt_ref.dtype)
        yn = _layer_norm_padded(yt, lne_g_ref[...], lne_b_ref[...], d_true, d_pad)
        yout_ref[...] = jnp.maximum(yn, 0.0).astype(yout_ref.dtype)


def _vertex_kernel(d_true, d_pad,
                   yt_ref, h_ref, x0_ref, dvin_ref,
                   wvma_ref, wvmb_ref, bvm_ref,
                   lnv_g_ref, lnv_b_ref,
                   xout_ref,
                   acc_ref, base_ref):
    """Vertex path. grid = (vertex-row tiles [parallel], edge tiles [reduce]).

    acc accumulates sum_k H_k @ Yt_k; base (at k==0) holds X0 @ Wvma + bvm.
      X_out = relu(LayerNorm_v(base + (D_v^{-1} acc) @ Wvmb))
    """
    k = pl.program_id(1)

    @pl.when(k == 0)
    def _():
        acc_ref[...] = jnp.zeros_like(acc_ref)
        base_ref[...] = (jnp.dot(x0_ref[...], wvma_ref[...],
                                 preferred_element_type=jnp.float32)
                         + bvm_ref[...])

    acc_ref[...] += jnp.dot(h_ref[...].astype(jnp.bfloat16), yt_ref[...],
                            preferred_element_type=jnp.float32)

    @pl.when(k == pl.num_programs(1) - 1)
    def _():
        agg_v = (acc_ref[...] * dvin_ref[...]).astype(jnp.bfloat16)
        xm = base_ref[...] + jnp.dot(agg_v, wvmb_ref[...],
                                     preferred_element_type=jnp.float32)
        xn = _layer_norm_padded(xm, lnv_g_ref[...], lnv_b_ref[...], d_true, d_pad)
        xout_ref[...] = jnp.maximum(xn, 0.0).astype(xout_ref.dtype)


# ----------------------------------------------------------------------------
# wrapper
# ----------------------------------------------------------------------------
def uniegnn_forward(X, Y, H, params, *, tv_target=512, te_target=512):
    """Parameter plumbing (transpose / fuse / pad / cast) + two tiled pallas_calls."""
    f32, bf16, i8 = jnp.float32, jnp.bfloat16, jnp.int8
    N_v, D = X.shape
    N_e = Y.shape[0]

    # --- tile sizes & padded shapes (rows AND lane dim multiples of 128) -----
    D_pad = _round_up(D, 128)
    TE = _pick_tile(N_e, te_target)
    TV = _pick_tile(N_v, tv_target)
    N_e_p = _round_up(N_e, TE)
    N_v_p = _round_up(N_v, TV)

    # --- inverse degrees (mean aggregation) + empty-edge indicator -----------
    deg_e = jnp.sum(H, axis=1 - 1) if False else jnp.sum(H, axis=0)
    deg_v = jnp.sum(H, axis=1)
    dein = jnp.where(deg_e > 0, 1.0 / deg_e, 0.0).astype(f32).reshape(N_e, 1)
    dvin = jnp.where(deg_v > 0, 1.0 / deg_v, 0.0).astype(f32).reshape(N_v, 1)
    emask = (deg_e > 0).astype(f32).reshape(N_e, 1)   # theta_vertex bias gate
    dein_p = _pad2(dein, N_e_p, 1)
    dvin_p = _pad2(dvin, N_v_p, 1)
    emask_p = _pad2(emask, N_e_p, 1)

    # --- weights: torch Linear y = x @ W.T + b  ->  pass W.T, then fold ------
    wv = params["theta_vertex_w"].T.astype(f32)                  # [D, D]
    bv = params["theta_vertex_b"].reshape(1, D).astype(f32)
    we = params["theta_edge_w"].T.astype(f32)                    # [D, D]
    wem = params["edge_merge_w"].T.astype(f32)                   # [2D, D]
    wea = wem[:D, :] @ we                                        # acts on Y0
    web = wem[D:, :] @ we                                        # acts on agg_e
    wvweb = wv @ web                                             # acts on D_e^{-1} H^T X
    bvweb = bv @ web                                             # theta_vertex bias path
    bef = (params["edge_merge_b"].reshape(1, D).astype(f32) @ we
           + params["theta_edge_b"].reshape(1, D).astype(f32))
    wvm = params["vertex_merge_w"].T.astype(f32)                 # [2D, D]
    wvma, wvmb = wvm[:D, :], wvm[D:, :]
    bvm = params["vertex_merge_b"].reshape(1, D).astype(f32)

    # --- zero-pad / cast: matmul operands bf16, H int8 (exact for {0,1}) -----
    Xf = X.astype(f32)
    Hf = H.astype(f32)
    X_p = _pad2(Xf, N_v_p, D_pad).astype(bf16)
    Y0_p = _pad2(Y.astype(f32), N_e_p, D_pad).astype(bf16)
    H_p = _pad2(Hf, N_v_p, N_e_p).astype(i8)          # vertex path: H @ Yt
    Ht_p = _pad2(Hf.T, N_e_p, N_v_p).astype(i8)       # edge path:   H^T @ X (one-time transpose)

    wea_p = _pad2(wea, D_pad, D_pad).astype(bf16)
    wvweb_p = _pad2(wvweb, D_pad, D_pad).astype(bf16)
    wvma_p = _pad2(wvma, D_pad, D_pad).astype(bf16)
    wvmb_p = _pad2(wvmb, D_pad, D_pad).astype(bf16)
    bef_p = _pad2(bef, 1, D_pad)
    bvweb_p = _pad2(bvweb, 1, D_pad)
    bvm_p = _pad2(bvm, 1, D_pad)
    lnv_g = _pad2(params["ln_v_gamma"].reshape(1, D).astype(f32), 1, D_pad)
    lnv_b = _pad2(params["ln_v_beta"].reshape(1, D).astype(f32), 1, D_pad)
    lne_g = _pad2(params["ln_e_gamma"].reshape(1, D).astype(f32), 1, D_pad)
    lne_b = _pad2(params["ln_e_beta"].reshape(1, D).astype(f32), 1, D_pad)

    cparams = pltpu.CompilerParams(
        dimension_semantics=("parallel", "arbitrary"),
        vmem_limit_bytes=32 * 1024 * 1024)

    full_w = lambda i, k: (0, 0)

    # ----------------------- call 1: edge path ------------------------------
    grid_e = (N_e_p // TE, N_v_p // TV)
    yt_p, yout_p = pl.pallas_call(
        functools.partial(_edge_kernel, D, D_pad),
        out_shape=(jax.ShapeDtypeStruct((N_e_p, D_pad), bf16),   # raw Yt (feeds call 2)
                   jax.ShapeDtypeStruct((N_e_p, D_pad), bf16)),  # relu(LN_e(Yt))
        grid_spec=pltpu.PrefetchScalarGridSpec(
            num_scalar_prefetch=0,
            grid=grid_e,
            in_specs=[
                pl.BlockSpec((TV, D_pad), lambda j, k: (k, 0)),   # X
                pl.BlockSpec((TE, TV), lambda j, k: (j, k)),      # H^T (int8)
                pl.BlockSpec((TE, D_pad), lambda j, k: (j, 0)),   # Y0
                pl.BlockSpec((TE, 1), lambda j, k: (j, 0)),       # deg_e^{-1}
                pl.BlockSpec((TE, 1), lambda j, k: (j, 0)),       # 1[deg_e>0]
                pl.BlockSpec((D_pad, D_pad), full_w),             # Wem_a @ We
                pl.BlockSpec((D_pad, D_pad), full_w),             # Wv @ (Wem_b @ We)
                pl.BlockSpec((1, D_pad), full_w),                 # fused bias (bem We + be)
                pl.BlockSpec((1, D_pad), full_w),                 # bv @ (Wem_b @ We)
                pl.BlockSpec((1, D_pad), full_w),                 # ln_e gamma
                pl.BlockSpec((1, D_pad), full_w),                 # ln_e beta
            ],
            out_specs=(pl.BlockSpec((TE, D_pad), lambda j, k: (j, 0)),
                       pl.BlockSpec((TE, D_pad), lambda j, k: (j, 0))),
            scratch_shapes=[pltpu.VMEM((TE, D_pad), jnp.float32),   # acc
                            pltpu.VMEM((TE, D_pad), jnp.float32)],  # base
        ),
        compiler_params=cparams,
    )(X_p, Ht_p, Y0_p, dein_p, emask_p,
      wea_p, wvweb_p, bef_p, bvweb_p, lne_g, lne_b)

    # ----------------------- call 2: vertex path ----------------------------
    grid_v = (N_v_p // TV, N_e_p // TE)
    xout_p = pl.pallas_call(
        functools.partial(_vertex_kernel, D, D_pad),
        out_shape=jax.ShapeDtypeStruct((N_v_p, D_pad), bf16),
        grid_spec=pltpu.PrefetchScalarGridSpec(
            num_scalar_prefetch=0,
            grid=grid_v,
            in_specs=[
                pl.BlockSpec((TE, D_pad), lambda i, k: (k, 0)),   # Yt
                pl.BlockSpec((TV, TE), lambda i, k: (i, k)),      # H (int8)
                pl.BlockSpec((TV, D_pad), lambda i, k: (i, 0)),   # X0
                pl.BlockSpec((TV, 1), lambda i, k: (i, 0)),       # deg_v^{-1}
                pl.BlockSpec((D_pad, D_pad), full_w),             # Wvm_a
                pl.BlockSpec((D_pad, D_pad), full_w),             # Wvm_b
                pl.BlockSpec((1, D_pad), full_w),                 # bvm
                pl.BlockSpec((1, D_pad), full_w),                 # ln_v gamma
                pl.BlockSpec((1, D_pad), full_w),                 # ln_v beta
            ],
            out_specs=pl.BlockSpec((TV, D_pad), lambda i, k: (i, 0)),
            scratch_shapes=[pltpu.VMEM((TV, D_pad), jnp.float32),   # acc
                            pltpu.VMEM((TV, D_pad), jnp.float32)],  # base
        ),
        compiler_params=cparams,
    )(yt_p, H_p, X_p, dvin_p, wvma_p, wvmb_p, bvm_p, lnv_g, lnv_b)

    # slice padded rows / lanes off; return f32 like the torch module
    x_out = xout_p[:N_v, :D].astype(jnp.float32)
    y_out = yout_p[:N_e, :D].astype(jnp.float32)
    return x_out, y_out   # fix_edge=False -> (X_new, Y_new)


# ----------------------------------------------------------------------------
# pure-JAX reference (mirrors the PyTorch forward, f32 throughout)
# ----------------------------------------------------------------------------
def ref_forward(X, Y, H, params):
    deg_e = jnp.sum(H, axis=0)
    deg_v = jnp.sum(H, axis=1)
    deg_e_inv = jnp.where(deg_e > 0, 1.0 / deg_e, 0.0)
    deg_v_inv = jnp.where(deg_v > 0, 1.0 / deg_v, 0.0)
    Xt = X @ params["theta_vertex_w"].T + params["theta_vertex_b"]
    agg_e = (H.T @ Xt) * deg_e_inv[:, None]
    Ym = jnp.concatenate([Y, agg_e], -1) @ params["edge_merge_w"].T + params["edge_merge_b"]
    Yt = Ym @ params["theta_edge_w"].T + params["theta_edge_b"]
    agg_v = (H @ Yt) * deg_v_inv[:, None]
    Xm = jnp.concatenate([X, agg_v], -1) @ params["vertex_merge_w"].T + params["vertex_merge_b"]
    Xn = _layer_norm(Xm, params["ln_v_gamma"], params["ln_v_beta"])
    Yn = _layer_norm(Yt, params["ln_e_gamma"], params["ln_e_beta"])
    return jnp.maximum(Xn, 0.0), jnp.maximum(Yn, 0.0)


def make_params(key, D):
    ks = jax.random.split(key, 12)
    n = jax.random.normal
    f32 = jnp.float32
    return {
        "theta_vertex_w": (0.1 * n(ks[0], (D, D))).astype(f32),
        "theta_vertex_b": (0.1 * n(ks[1], (D,))).astype(f32),
        "theta_edge_w":   (0.1 * n(ks[2], (D, D))).astype(f32),
        "theta_edge_b":   (0.1 * n(ks[3], (D,))).astype(f32),
        "edge_merge_w":   (0.1 * n(ks[4], (D, 2 * D))).astype(f32),
        "edge_merge_b":   (0.1 * n(ks[5], (D,))).astype(f32),
        "vertex_merge_w": (0.1 * n(ks[6], (D, 2 * D))).astype(f32),
        "vertex_merge_b": (0.1 * n(ks[7], (D,))).astype(f32),
        "ln_v_gamma": (1.0 + 0.1 * n(ks[8], (D,))).astype(f32),
        "ln_v_beta":  (0.1 * n(ks[9], (D,))).astype(f32),
        "ln_e_gamma": (1.0 + 0.1 * n(ks[10], (D,))).astype(f32),
        "ln_e_beta":  (0.1 * n(ks[11], (D,))).astype(f32),
    }


if __name__ == "__main__":
    key = jax.random.PRNGKey(0)
    N_v, N_e, D = 64, 32, 32   # vertices, hyperedges, hidden (v_channels == e_channels)

    k_x, k_y, k_h, k_p = jax.random.split(key, 4)
    X = jax.random.normal(k_x, (N_v, D), dtype=jnp.float32)
    Y = jax.random.normal(k_y, (N_e, D), dtype=jnp.float32)

    # Dense incidence matrix; guarantee every vertex is in >=1 edge and every
    # edge has >=1 vertex (so the mean aggregations never divide by zero).
    bern = jax.random.bernoulli(k_h, 0.3, (N_v, N_e)).astype(jnp.float32)
    base = (jnp.arange(N_v)[:, None] % N_e == jnp.arange(N_e)[None, :]).astype(jnp.float32)
    H = jnp.maximum(bern, base)

    params = make_params(k_p, D)

    fwd = jax.jit(uniegnn_forward)
    x_out, y_out = fwd(X, Y, H, params)
    jax.block_until_ready((x_out, y_out))

    x_ref, y_ref = ref_forward(X, Y, H, params)
    assert x_out.shape == (N_v, D) and y_out.shape == (N_e, D)
    # bf16 matmul operands / bf16 output stores with f32 accumulation & LN ->
    # bf16-level tolerance vs the f32 reference.
    assert jnp.allclose(x_out, x_ref, rtol=5e-2, atol=5e-2), "vertex output mismatch"
    assert jnp.allclose(y_out, y_ref, rtol=5e-2, atol=5e-2), "edge output mismatch"

    print("KERNEL_OK")
</pallas_src>

<mosaic_0001>
module attributes {stable_mosaic.version = 11 : i64} {
  func.func @_edge_kernel(%arg0: i32, %arg1: i32, %arg2: memref<128x128xbf16, #tpu.memory_space<vmem>>, %arg3: memref<128x128xi8, #tpu.memory_space<vmem>>, %arg4: memref<128x128xbf16, #tpu.memory_space<vmem>>, %arg5: memref<128x1xf32, #tpu.memory_space<vmem>>, %arg6: memref<128x1xf32, #tpu.memory_space<vmem>>, %arg7: memref<128x128xbf16, #tpu.memory_space<vmem>>, %arg8: memref<128x128xbf16, #tpu.memory_space<vmem>>, %arg9: memref<1x128xf32, #tpu.memory_space<vmem>>, %arg10: memref<1x128xf32, #tpu.memory_space<vmem>>, %arg11: memref<1x128xf32, #tpu.memory_space<vmem>>, %arg12: memref<1x128xf32, #tpu.memory_space<vmem>>, %arg13: memref<128x128xbf16, #tpu.memory_space<vmem>>, %arg14: memref<128x128xbf16, #tpu.memory_space<vmem>>, %arg15: memref<128x128xf32, #tpu.memory_space<vmem>>, %arg16: memref<128x128xf32, #tpu.memory_space<vmem>>) attributes {dimension_semantics = [#tpu.dimension_semantics<parallel>, #tpu.dimension_semantics<arbitrary>], iteration_bounds = array<i64: 1, 1>, scalar_prefetch = 0 : i64, scratch_operands = 2 : i64, tpu.core_type = #tpu.core_type<tc>, window_params = [{transform_indices = @transform_0, window_bounds = array<i64: 128, 128>}, {transform_indices = @transform_1, window_bounds = array<i64: 128, 128>}, {transform_indices = @transform_2, window_bounds = array<i64: 128, 128>}, {transform_indices = @transform_3, window_bounds = array<i64: 128, 1>}, {transform_indices = @transform_4, window_bounds = array<i64: 128, 1>}, {pipeline_mode = #tpu.pipeline_mode<synchronous>, transform_indices = @transform_5, window_bounds = array<i64: 128, 128>}, {pipeline_mode = #tpu.pipeline_mode<synchronous>, transform_indices = @transform_6, window_bounds = array<i64: 128, 128>}, {pipeline_mode = #tpu.pipeline_mode<synchronous>, transform_indices = @transform_7, window_bounds = array<i64: 1, 128>}, {pipeline_mode = #tpu.pipeline_mode<synchronous>, transform_indices = @transform_8, window_bounds = array<i64: 1, 128>}, {pipeline_mode = #tpu.pipeline_mode<synchronous>, transform_indices = @transform_9, window_bounds = array<i64: 1, 128>}, {pipeline_mode = #tpu.pipeline_mode<synchronous>, transform_indices = @transform_10, window_bounds = array<i64: 1, 128>}, {transform_indices = @transform_11, window_bounds = array<i64: 128, 128>}, {transform_indices = @transform_12, window_bounds = array<i64: 128, 128>}]} {
    %c0_i32 = arith.constant 0 : i32
    %0 = arith.cmpi eq, %arg1, %c0_i32 : i32
    %1 = arith.extui %0 : i1 to i32
    %c0_i32_0 = arith.constant 0 : i32
    %2 = arith.cmpi ne, %1, %c0_i32_0 : i32
    scf.if %2 {
      %cst_10 = arith.constant 0.000000e+00 : f32
      %13 = vector.broadcast %cst_10 : f32 to vector<128x128xf32>
      %c0_11 = arith.constant 0 : index
      %c0_12 = arith.constant 0 : index
      %14 = vector.load %arg15[%c0_11, %c0_12] : memref<128x128xf32, #tpu.memory_space<vmem>>, vector<128x128xf32>
      tpu.vector_store %arg15[%c0_11, %c0_12], %13 {strides = array<i32>} : memref<128x128xf32, #tpu.memory_space<vmem>>, vector<128x128xf32>,
      %c0_13 = arith.constant 0 : index
      %c0_14 = arith.constant 0 : index
      %15 = vector.load %arg4[%c0_13, %c0_14] : memref<128x128xbf16, #tpu.memory_space<vmem>>, vector<128x128xbf16>
      %c0_15 = arith.constant 0 : index
      %c0_16 = arith.constant 0 : index
      %16 = vector.load %arg7[%c0_15, %c0_16] : memref<128x128xbf16, #tpu.memory_space<vmem>>, vector<128x128xbf16>
      %cst_17 = arith.constant dense<0.000000e+00> : vector<128x128xf32>
      %17 = tpu.matmul %15, %16, %cst_17 {dimension_numbers = #tpu.dot_dimension_numbers<[1], [0], [0], [1], [0, 0, 1, 1], [], []>} : vector<128x128xbf16>, vector<128x128xbf16>, vector<128x128xf32> -> vector<128x128xf32>
      %c0_18 = arith.constant 0 : index
      %c0_19 = arith.constant 0 : index
      %18 = vector.load %arg9[%c0_18, %c0_19] : memref<1x128xf32, #tpu.memory_space<vmem>>, vector<1x128xf32>
      %19 = vector.broadcast %18 : vector<1x128xf32> to vector<128x128xf32>
      %20 = arith.addf %17, %19 : vector<128x128xf32>
      %c0_20 = arith.constant 0 : index
      %c0_21 = arith.constant 0 : index
      %21 = vector.load %arg16[%c0_20, %c0_21] : memref<128x128xf32, #tpu.memory_space<vmem>>, vector<128x128xf32>
      tpu.vector_store %arg16[%c0_20, %c0_21], %20 {strides = array<i32>} : memref<128x128xf32, #tpu.memory_space<vmem>>, vector<128x128xf32>,
    } else {
    }
    %c0 = arith.constant 0 : index
    %c0_1 = arith.constant 0 : index
    %3 = vector.load %arg15[%c0, %c0_1] : memref<128x128xf32, #tpu.memory_space<vmem>>, vector<128x128xf32>
    %c0_2 = arith.constant 0 : index
    %c0_3 = arith.constant 0 : index
    %4 = vector.load %arg3[%c0_2, %c0_3] : memref<128x128xi8, #tpu.memory_space<vmem>>, vector<128x128xi8>
    %5 = arith.sitofp %4 : vector<128x128xi8> to vector<128x128xbf16>
    %c0_4 = arith.constant 0 : index
    %c0_5 = arith.constant 0 : index
    %6 = vector.load %arg2[%c0_4, %c0_5] : memref<128x128xbf16, #tpu.memory_space<vmem>>, vector<128x128xbf16>
    %cst = arith.constant dense<0.000000e+00> : vector<128x128xf32>
    %7 = tpu.matmul %5, %6, %cst {dimension_numbers = #tpu.dot_dimension_numbers<[1], [0], [0], [1], [0, 0, 1, 1], [], []>} : vector<128x128xbf16>, vector<128x128xbf16>, vector<128x128xf32> -> vector<128x128xf32>
    %8 = arith.addf %3, %7 : vector<128x128xf32>
    %c0_6 = arith.constant 0 : index
    %c0_7 = arith.constant 0 : index
    %9 = vector.load %arg15[%c0_6, %c0_7] : memref<128x128xf32, #tpu.memory_space<vmem>>, vector<128x128xf32>
    tpu.vector_store %arg15[%c0_6, %c0_7], %8 {strides = array<i32>} : memref<128x128xf32, #tpu.memory_space<vmem>>, vector<128x128xf32>,
    %c0_i32_8 = arith.constant 0 : i32
    %10 = arith.cmpi eq, %arg1, %c0_i32_8 : i32
    %11 = arith.extui %10 : i1 to i32
    %c0_i32_9 = arith.constant 0 : i32
    %12 = arith.cmpi ne, %11, %c0_i32_9 : i32
    scf.if %12 {
      %c0_10 = arith.constant 0 : index
      %c0_11 = arith.constant 0 : index
      %13 = vector.load %arg15[%c0_10, %c0_11] : memref<128x128xf32, #tpu.memory_space<vmem>>, vector<128x128xf32>
      %c0_12 = arith.constant 0 : index
      %c0_13 = arith.constant 0 : index
      %14 = vector.load %arg5[%c0_12, %c0_13] : memref<128x1xf32, #tpu.memory_space<vmem>>, vector<128x1xf32>
      %15 = vector.broadcast %14 : vector<128x1xf32> to vector<128x128xf32>
      %16 = arith.mulf %13, %15 : vector<128x128xf32>
      %17 = arith.truncf %16 : vector<128x128xf32> to vector<128x128xbf16>
      %c0_14 = arith.constant 0 : index
      %c0_15 = arith.constant 0 : index
      %18 = vector.load %arg16[%c0_14, %c0_15] : memref<128x128xf32, #tpu.memory_space<vmem>>, vector<128x128xf32>
      %c0_16 = arith.constant 0 : index
      %c0_17 = arith.constant 0 : index
      %19 = vector.load %arg8[%c0_16, %c0_17] : memref<128x128xbf16, #tpu.memory_space<vmem>>, vector<128x128xbf16>
      %cst_18 = arith.constant dense<0.000000e+00> : vector<128x128xf32>
      %20 = tpu.matmul %17, %19, %cst_18 {dimension_numbers = #tpu.dot_dimension_numbers<[1], [0], [0], [1], [0, 0, 1, 1], [], []>} : vector<128x128xbf16>, vector<128x128xbf16>, vector<128x128xf32> -> vector<128x128xf32>
      %21 = arith.addf %18, %20 : vector<128x128xf32>
      %c0_19 = arith.constant 0 : index
      %c0_20 = arith.constant 0 : index
      %22 = vector.load %arg6[%c0_19, %c0_20] : memref<128x1xf32, #tpu.memory_space<vmem>>, vector<128x1xf32>
      %c0_21 = arith.constant 0 : index
      %c0_22 = arith.constant 0 : index
      %23 = vector.load %arg10[%c0_21, %c0_22] : memref<1x128xf32, #tpu.memory_space<vmem>>, vector<1x128xf32>
      %24 = vector.broadcast %22 : vector<128x1xf32> to vector<128x128xf32>
      %25 = vector.broadcast %23 : vector<1x128xf32> to vector<128x128xf32>
      %26 = arith.mulf %24, %25 : vector<128x128xf32>
      %27 = arith.addf %21, %26 : vector<128x128xf32>
      %28 = arith.truncf %27 : vector<128x128xf32> to vector<128x128xbf16>
      %c0_23 = arith.constant 0 : index
      %c0_24 = arith.constant 0 : index
      %29 = vector.load %arg13[%c0_23, %c0_24] : memref<128x128xbf16, #tpu.memory_space<vmem>>, vector<128x128xbf16>
      tpu.vector_store %arg13[%c0_23, %c0_24], %28 {strides = array<i32>} : memref<128x128xbf16, #tpu.memory_space<vmem>>, vector<128x128xbf16>,
      %c0_25 = arith.constant 0 : index
      %c0_26 = arith.constant 0 : index
      %30 = vector.load %arg11[%c0_25, %c0_26] : memref<1x128xf32, #tpu.memory_space<vmem>>, vector<1x128xf32>
      %c0_27 = arith.constant 0 : index
      %c0_28 = arith.constant 0 : index
      %31 = vector.load %arg12[%c0_27, %c0_28] : memref<1x128xf32, #tpu.memory_space<vmem>>, vector<1x128xf32>
      %cst_29 = arith.constant dense<0.000000e+00> : vector<128xf32>
      %32 = vector.multi_reduction <add>, %27, %cst_29 [1] : vector<128x128xf32> to vector<128xf32>
      %33 = vector.shape_cast %32 : vector<128xf32> to vector<128x1xf32>
      %cst_30 = arith.constant 3.125000e-02 : f32
      %34 = vector.broadcast %cst_30 : f32 to vector<128x1xf32>
      %35 = arith.mulf %33, %34 : vector<128x1xf32>
      %36 = vector.broadcast %35 : vector<128x1xf32> to vector<128x128xf32>
      %37 = arith.subf %27, %36 : vector<128x128xf32>
      %38 = tpu.iota {dimensions = array<i32: 1>} : vector<1x128xi32>
      %c32_i32 = arith.constant 32 : i32
      %39 = vector.broadcast %c32_i32 : i32 to vector<1x128xi32>
      %40 = arith.cmpi slt, %38, %39 : vector<1x128xi32>
      %cst_31 = arith.constant 0.000000e+00 : f32
      %41 = vector.shape_cast %40 : vector<1x128xi1> to vector<1x128xi1>
      %42 = vector.broadcast %41 : vector<1x128xi1> to vector<128x128xi1>
      %43 = vector.broadcast %cst_31 : f32 to vector<128x128xf32>
      %44 = arith.select %42, %37, %43 : vector<128x128xi1>, vector<128x128xf32>
      %45 = arith.mulf %44, %44 : vector<128x128xf32>
      %cst_32 = arith.constant dense<0.000000e+00> : vector<128xf32>
      %46 = vector.multi_reduction <add>, %45, %cst_32 [1] : vector<128x128xf32> to vector<128xf32>
      %47 = vector.shape_cast %46 : vector<128xf32> to vector<128x1xf32>
      %cst_33 = arith.constant 3.125000e-02 : f32
      %48 = vector.broadcast %cst_33 : f32 to vector<128x1xf32>
      %49 = arith.mulf %47, %48 : vector<128x1xf32>
      %cst_34 = arith.constant 9.99999974E-6 : f32
      %50 = vector.broadcast %cst_34 : f32 to vector<128x1xf32>
      %51 = arith.addf %49, %50 : vector<128x1xf32>
      %52 = math.rsqrt %51 : vector<128x1xf32>
      %53 = vector.broadcast %52 : vector<128x1xf32> to vector<128x128xf32>
      %54 = arith.mulf %44, %53 : vector<128x128xf32>
      %55 = vector.broadcast %30 : vector<1x128xf32> to vector<128x128xf32>
      %56 = arith.mulf %54, %55 : vector<128x128xf32>
      %57 = vector.broadcast %31 : vector<1x128xf32> to vector<128x128xf32>
      %58 = arith.addf %56, %57 : vector<128x128xf32>
      %cst_35 = arith.constant 0.000000e+00 : f32
      %59 = vector.broadcast %cst_35 : f32 to vector<128x128xf32>
      %60 = arith.maximumf %58, %59 : vector<128x128xf32>
      %61 = arith.truncf %60 : vector<128x128xf32> to vector<128x128xbf16>
      %c0_36 = arith.constant 0 : index
      %c0_37 = arith.constant 0 : index
      %62 = vector.load %arg14[%c0_36, %c0_37] : memref<128x128xbf16, #tpu.memory_space<vmem>>, vector<128x128xbf16>
      tpu.vector_store %arg14[%c0_36, %c0_37], %61 {strides = array<i32>} : memref<128x128xbf16, #tpu.memory_space<vmem>>, vector<128x128xbf16>,
    } else {
    }
    return
  }
  func.func @transform_0(%arg0: i32, %arg1: i32) -> (i32, i32) {
    %c0_i32 = arith.constant 0 : i32
    %c0_i32_0 = arith.constant 0 : i32
    return %arg1, %c0_i32 : i32, i32
  }
  func.func @transform_1(%arg0: i32, %arg1: i32) -> (i32, i32) {
    %c0_i32 = arith.constant 0 : i32
    return %arg0, %arg1 : i32, i32
  }
  func.func @transform_2(%arg0: i32, %arg1: i32) -> (i32, i32) {
    %c0_i32 = arith.constant 0 : i32
    %c0_i32_0 = arith.constant 0 : i32
    return %arg0, %c0_i32 : i32, i32
  }
  func.func @transform_3(%arg0: i32, %arg1: i32) -> (i32, i32) {
    %c0_i32 = arith.constant 0 : i32
    %c0_i32_0 = arith.constant 0 : i32
    return %arg0, %c0_i32 : i32, i32
  }
  func.func @transform_4(%arg0: i32, %arg1: i32) -> (i32, i32) {
    %c0_i32 = arith.constant 0 : i32
    %c0_i32_0 = arith.constant 0 : i32
    return %arg0, %c0_i32 : i32, i32
  }
  func.func @transform_5(%arg0: i32, %arg1: i32) -> (i32, i32) {
    %c0_i32 = arith.constant 0 : i32
    %c0_i32_0 = arith.constant 0 : i32
    %c0_i32_1 = arith.constant 0 : i32
    return %c0_i32, %c0_i32_0 : i32, i32
  }
  func.func @transform_6(%arg0: i32, %arg1: i32) -> (i32, i32) {
    %c0_i32 = arith.constant 0 : i32
    %c0_i32_0 = arith.constant 0 : i32
    %c0_i32_1 = arith.constant 0 : i32
    return %c0_i32, %c0_i32_0 : i32, i32
  }
  func.func @transform_7(%arg0: i32, %arg1: i32) -> (i32, i32) {
    %c0_i32 = arith.constant 0 : i32
    %c0_i32_0 = arith.constant 0 : i32
    %c0_i32_1 = arith.constant 0 : i32
    return %c0_i32, %c0_i32_0 : i32, i32
  }
  func.func @transform_8(%arg0: i32, %arg1: i32) -> (i32, i32) {
    %c0_i32 = arith.constant 0 : i32
    %c0_i32_0 = arith.constant 0 : i32
    %c0_i32_1 = arith.constant 0 : i32
    return %c0_i32, %c0_i32_0 : i32, i32
  }
  func.func @transform_9(%arg0: i32, %arg1: i32) -> (i32, i32) {
    %c0_i32 = arith.constant 0 : i32
    %c0_i32_0 = arith.constant 0 : i32
    %c0_i32_1 = arith.constant 0 : i32
    return %c0_i32, %c0_i32_0 : i32, i32
  }
  func.func @transform_10(%arg0: i32, %arg1: i32) -> (i32, i32) {
    %c0_i32 = arith.constant 0 : i32
    %c0_i32_0 = arith.constant 0 : i32
    %c0_i32_1 = arith.constant 0 : i32
    return %c0_i32, %c0_i32_0 : i32, i32
  }
  func.func @transform_11(%arg0: i32, %arg1: i32) -> (i32, i32) {
    %c0_i32 = arith.constant 0 : i32
    %c0_i32_0 = arith.constant 0 : i32
    return %arg0, %c0_i32 : i32, i32
  }
  func.func @transform_12(%arg0: i32, %arg1: i32) -> (i32, i32) {
    %c0_i32 = arith.constant 0 : i32
    %c0_i32_0 = arith.constant 0 : i32
    return %arg0, %c0_i32 : i32, i32
  }
}

module attributes {stable_mosaic.version = 11 : i64} {
  func.func @_vertex_kernel(%arg0: i32, %arg1: i32, %arg2: memref<128x128xbf16, #tpu.memory_space<vmem>>, %arg3: memref<128x128xi8, #tpu.memory_space<vmem>>, %arg4: memref<128x128xbf16, #tpu.memory_space<vmem>>, %arg5: memref<128x1xf32, #tpu.memory_space<vmem>>, %arg6: memref<128x128xbf16, #tpu.memory_space<vmem>>, %arg7: memref<128x128xbf16, #tpu.memory_space<vmem>>, %arg8: memref<1x128xf32, #tpu.memory_space<vmem>>, %arg9: memref<1x128xf32, #tpu.memory_space<vmem>>, %arg10: memref<1x128xf32, #tpu.memory_space<vmem>>, %arg11: memref<128x128xbf16, #tpu.memory_space<vmem>>, %arg12: memref<128x128xf32, #tpu.memory_space<vmem>>, %arg13: memref<128x128xf32, #tpu.memory_space<vmem>>) attributes {dimension_semantics = [#tpu.dimension_semantics<parallel>, #tpu.dimension_semantics<arbitrary>], iteration_bounds = array<i64: 1, 1>, scalar_prefetch = 0 : i64, scratch_operands = 2 : i64, tpu.core_type = #tpu.core_type<tc>, window_params = [{transform_indices = @transform_0, window_bounds = array<i64: 128, 128>}, {transform_indices = @transform_1, window_bounds = array<i64: 128, 128>}, {transform_indices = @transform_2, window_bounds = array<i64: 128, 128>}, {transform_indices = @transform_3, window_bounds = array<i64: 128, 1>}, {pipeline_mode = #tpu.pipeline_mode<synchronous>, transform_indices = @transform_4, window_bounds = array<i64: 128, 128>}, {pipeline_mode = #tpu.pipeline_mode<synchronous>, transform_indices = @transform_5, window_bounds = array<i64: 128, 128>}, {pipeline_mode = #tpu.pipeline_mode<synchronous>, transform_indices = @transform_6, window_bounds = array<i64: 1, 128>}, {pipeline_mode = #tpu.pipeline_mode<synchronous>, transform_indices = @transform_7, window_bounds = array<i64: 1, 128>}, {pipeline_mode = #tpu.pipeline_mode<synchronous>, transform_indices = @transform_8, window_bounds = array<i64: 1, 128>}, {transform_indices = @transform_9, window_bounds = array<i64: 128, 128>}]} {
    %c0_i32 = arith.constant 0 : i32
    %0 = arith.cmpi eq, %arg1, %c0_i32 : i32
    %1 = arith.extui %0 : i1 to i32
    %c0_i32_0 = arith.constant 0 : i32
    %2 = arith.cmpi ne, %1, %c0_i32_0 : i32
    scf.if %2 {
      %cst_10 = arith.constant 0.000000e+00 : f32
      %13 = vector.broadcast %cst_10 : f32 to vector<128x128xf32>
      %c0_11 = arith.constant 0 : index
      %c0_12 = arith.constant 0 : index
      %14 = vector.load %arg12[%c0_11, %c0_12] : memref<128x128xf32, #tpu.memory_space<vmem>>, vector<128x128xf32>
      tpu.vector_store %arg12[%c0_11, %c0_12], %13 {strides = array<i32>} : memref<128x128xf32, #tpu.memory_space<vmem>>, vector<128x128xf32>,
      %c0_13 = arith.constant 0 : index
      %c0_14 = arith.constant 0 : index
      %15 = vector.load %arg4[%c0_13, %c0_14] : memref<128x128xbf16, #tpu.memory_space<vmem>>, vector<128x128xbf16>
      %c0_15 = arith.constant 0 : index
      %c0_16 = arith.constant 0 : index
      %16 = vector.load %arg6[%c0_15, %c0_16] : memref<128x128xbf16, #tpu.memory_space<vmem>>, vector<128x128xbf16>
      %cst_17 = arith.constant dense<0.000000e+00> : vector<128x128xf32>
      %17 = tpu.matmul %15, %16, %cst_17 {dimension_numbers = #tpu.dot_dimension_numbers<[1], [0], [0], [1], [0, 0, 1, 1], [], []>} : vector<128x128xbf16>, vector<128x128xbf16>, vector<128x128xf32> -> vector<128x128xf32>
      %c0_18 = arith.constant 0 : index
      %c0_19 = arith.constant 0 : index
      %18 = vector.load %arg8[%c0_18, %c0_19] : memref<1x128xf32, #tpu.memory_space<vmem>>, vector<1x128xf32>
      %19 = vector.broadcast %18 : vector<1x128xf32> to vector<128x128xf32>
      %20 = arith.addf %17, %19 : vector<128x128xf32>
      %c0_20 = arith.constant 0 : index
      %c0_21 = arith.constant 0 : index
      %21 = vector.load %arg13[%c0_20, %c0_21] : memref<128x128xf32, #tpu.memory_space<vmem>>, vector<128x128xf32>
      tpu.vector_store %arg13[%c0_20, %c0_21], %20 {strides = array<i32>} : memref<128x128xf32, #tpu.memory_space<vmem>>, vector<128x128xf32>,
    } else {
    }
    %c0 = arith.constant 0 : index
    %c0_1 = arith.constant 0 : index
    %3 = vector.load %arg12[%c0, %c0_1] : memref<128x128xf32, #tpu.memory_space<vmem>>, vector<128x128xf32>
    %c0_2 = arith.constant 0 : index
    %c0_3 = arith.constant 0 : index
    %4 = vector.load %arg3[%c0_2, %c0_3] : memref<128x128xi8, #tpu.memory_space<vmem>>, vector<128x128xi8>
    %5 = arith.sitofp %4 : vector<128x128xi8> to vector<128x128xbf16>
    %c0_4 = arith.constant 0 : index
    %c0_5 = arith.constant 0 : index
    %6 = vector.load %arg2[%c0_4, %c0_5] : memref<128x128xbf16, #tpu.memory_space<vmem>>, vector<128x128xbf16>
    %cst = arith.constant dense<0.000000e+00> : vector<128x128xf32>
    %7 = tpu.matmul %5, %6, %cst {dimension_numbers = #tpu.dot_dimension_numbers<[1], [0], [0], [1], [0, 0, 1, 1], [], []>} : vector<128x128xbf16>, vector<128x128xbf16>, vector<128x128xf32> -> vector<128x128xf32>
    %8 = arith.addf %3, %7 : vector<128x128xf32>
    %c0_6 = arith.constant 0 : index
    %c0_7 = arith.constant 0 : index
    %9 = vector.load %arg12[%c0_6, %c0_7] : memref<128x128xf32, #tpu.memory_space<vmem>>, vector<128x128xf32>
    tpu.vector_store %arg12[%c0_6, %c0_7], %8 {strides = array<i32>} : memref<128x128xf32, #tpu.memory_space<vmem>>, vector<128x128xf32>,
    %c0_i32_8 = arith.constant 0 : i32
    %10 = arith.cmpi eq, %arg1, %c0_i32_8 : i32
    %11 = arith.extui %10 : i1 to i32
    %c0_i32_9 = arith.constant 0 : i32
    %12 = arith.cmpi ne, %11, %c0_i32_9 : i32
    scf.if %12 {
      %c0_10 = arith.constant 0 : index
      %c0_11 = arith.constant 0 : index
      %13 = vector.load %arg12[%c0_10, %c0_11] : memref<128x128xf32, #tpu.memory_space<vmem>>, vector<128x128xf32>
      %c0_12 = arith.constant 0 : index
      %c0_13 = arith.constant 0 : index
      %14 = vector.load %arg5[%c0_12, %c0_13] : memref<128x1xf32, #tpu.memory_space<vmem>>, vector<128x1xf32>
      %15 = vector.broadcast %14 : vector<128x1xf32> to vector<128x128xf32>
      %16 = arith.mulf %13, %15 : vector<128x128xf32>
      %17 = arith.truncf %16 : vector<128x128xf32> to vector<128x128xbf16>
      %c0_14 = arith.constant 0 : index
      %c0_15 = arith.constant 0 : index
      %18 = vector.load %arg13[%c0_14, %c0_15] : memref<128x128xf32, #tpu.memory_space<vmem>>, vector<128x128xf32>
      %c0_16 = arith.constant 0 : index
      %c0_17 = arith.constant 0 : index
      %19 = vector.load %arg7[%c0_16, %c0_17] : memref<128x128xbf16, #tpu.memory_space<vmem>>, vector<128x128xbf16>
      %cst_18 = arith.constant dense<0.000000e+00> : vector<128x128xf32>
      %20 = tpu.matmul %17, %19, %cst_18 {dimension_numbers = #tpu.dot_dimension_numbers<[1], [0], [0], [1], [0, 0, 1, 1], [], []>} : vector<128x128xbf16>, vector<128x128xbf16>, vector<128x128xf32> -> vector<128x128xf32>
      %21 = arith.addf %18, %20 : vector<128x128xf32>
      %c0_19 = arith.constant 0 : index
      %c0_20 = arith.constant 0 : index
      %22 = vector.load %arg9[%c0_19, %c0_20] : memref<1x128xf32, #tpu.memory_space<vmem>>, vector<1x128xf32>
      %c0_21 = arith.constant 0 : index
      %c0_22 = arith.constant 0 : index
      %23 = vector.load %arg10[%c0_21, %c0_22] : memref<1x128xf32, #tpu.memory_space<vmem>>, vector<1x128xf32>
      %cst_23 = arith.constant dense<0.000000e+00> : vector<128xf32>
      %24 = vector.multi_reduction <add>, %21, %cst_23 [1] : vector<128x128xf32> to vector<128xf32>
      %25 = vector.shape_cast %24 : vector<128xf32> to vector<128x1xf32>
      %cst_24 = arith.constant 3.125000e-02 : f32
      %26 = vector.broadcast %cst_24 : f32 to vector<128x1xf32>
      %27 = arith.mulf %25, %26 : vector<128x1xf32>
      %28 = vector.broadcast %27 : vector<128x1xf32> to vector<128x128xf32>
      %29 = arith.subf %21, %28 : vector<128x128xf32>
      %30 = tpu.iota {dimensions = array<i32: 1>} : vector<1x128xi32>
      %c32_i32 = arith.constant 32 : i32
      %31 = vector.broadcast %c32_i32 : i32 to vector<1x128xi32>
      %32 = arith.cmpi slt, %30, %31 : vector<1x128xi32>
      %cst_25 = arith.constant 0.000000e+00 : f32
      %33 = vector.shape_cast %32 : vector<1x128xi1> to vector<1x128xi1>
      %34 = vector.broadcast %33 : vector<1x128xi1> to vector<128x128xi1>
      %35 = vector.broadcast %cst_25 : f32 to vector<128x128xf32>
      %36 = arith.select %34, %29, %35 : vector<128x128xi1>, vector<128x128xf32>
      %37 = arith.mulf %36, %36 : vector<128x128xf32>
      %cst_26 = arith.constant dense<0.000000e+00> : vector<128xf32>
      %38 = vector.multi_reduction <add>, %37, %cst_26 [1] : vector<128x128xf32> to vector<128xf32>
      %39 = vector.shape_cast %38 : vector<128xf32> to vector<128x1xf32>
      %cst_27 = arith.constant 3.125000e-02 : f32
      %40 = vector.broadcast %cst_27 : f32 to vector<128x1xf32>
      %41 = arith.mulf %39, %40 : vector<128x1xf32>
      %cst_28 = arith.constant 9.99999974E-6 : f32
      %42 = vector.broadcast %cst_28 : f32 to vector<128x1xf32>
      %43 = arith.addf %41, %42 : vector<128x1xf32>
      %44 = math.rsqrt %43 : vector<128x1xf32>
      %45 = vector.broadcast %44 : vector<128x1xf32> to vector<128x128xf32>
      %46 = arith.mulf %36, %45 : vector<128x128xf32>
      %47 = vector.broadcast %22 : vector<1x128xf32> to vector<128x128xf32>
      %48 = arith.mulf %46, %47 : vector<128x128xf32>
      %49 = vector.broadcast %23 : vector<1x128xf32> to vector<128x128xf32>
      %50 = arith.addf %48, %49 : vector<128x128xf32>
      %cst_29 = arith.constant 0.000000e+00 : f32
      %51 = vector.broadcast %cst_29 : f32 to vector<128x128xf32>
      %52 = arith.maximumf %50, %51 : vector<128x128xf32>
      %53 = arith.truncf %52 : vector<128x128xf32> to vector<128x128xbf16>
      %c0_30 = arith.constant 0 : index
      %c0_31 = arith.constant 0 : index
      %54 = vector.load %arg11[%c0_30, %c0_31] : memref<128x128xbf16, #tpu.memory_space<vmem>>, vector<128x128xbf16>
      tpu.vector_store %arg11[%c0_30, %c0_31], %53 {strides = array<i32>} : memref<128x128xbf16, #tpu.memory_space<vmem>>, vector<128x128xbf16>,
    } else {
    }
    return
  }
  func.func @transform_0(%arg0: i32, %arg1: i32) -> (i32, i32) {
    %c0_i32 = arith.constant 0 : i32
    %c0_i32_0 = arith.constant 0 : i32
    return %arg1, %c0_i32 : i32, i32
  }
  func.func @transform_1(%arg0: i32, %arg1: i32) -> (i32, i32) {
    %c0_i32 = arith.constant 0 : i32
    return %arg0, %arg1 : i32, i32
  }
  func.func @transform_2(%arg0: i32, %arg1: i32) -> (i32, i32) {
    %c0_i32 = arith.constant 0 : i32
    %c0_i32_0 = arith.constant 0 : i32
    return %arg0, %c0_i32 : i32, i32
  }
  func.func @transform_3(%arg0: i32, %arg1: i32) -> (i32, i32) {
    %c0_i32 = arith.constant 0 : i32
    %c0_i32_0 = arith.constant 0 : i32
    return %arg0, %c0_i32 : i32, i32
  }
  func.func @transform_4(%arg0: i32, %arg1: i32) -> (i32, i32) {
    %c0_i32 = arith.constant 0 : i32
    %c0_i32_0 = arith.constant 0 : i32
    %c0_i32_1 = arith.constant 0 : i32
    return %c0_i32, %c0_i32_0 : i32, i32
  }
  func.func @transform_5(%arg0: i32, %arg1: i32) -> (i32, i32) {
    %c0_i32 = arith.constant 0 : i32
    %c0_i32_0 = arith.constant 0 : i32
    %c0_i32_1 = arith.constant 0 : i32
    return %c0_i32, %c0_i32_0 : i32, i32
  }
  func.func @transform_6(%arg0: i32, %arg1: i32) -> (i32, i32) {
    %c0_i32 = arith.constant 0 : i32
    %c0_i32_0 = arith.constant 0 : i32
    %c0_i32_1 = arith.constant 0 : i32
    return %c0_i32, %c0_i32_0 : i32, i32
  }
  func.func @transform_7(%arg0: i32, %arg1: i32) -> (i32, i32) {
    %c0_i32 = arith.constant 0 : i32
    %c0_i32_0 = arith.constant 0 : i32
    %c0_i32_1 = arith.constant 0 : i32
    return %c0_i32, %c0_i32_0 : i32, i32
  }
  func.func @transform_8(%arg0: i32, %arg1: i32) -> (i32, i32) {
    %c0_i32 = arith.constant 0 : i32
    %c0_i32_0 = arith.constant 0 : i32
    %c0_i32_1 = arith.constant 0 : i32
    return %c0_i32, %c0_i32_0 : i32, i32
  }
  func.func @transform_9(%arg0: i32, %arg1: i32) -> (i32, i32) {
    %c0_i32 = arith.constant 0 : i32
    %c0_i32_0 = arith.constant 0 : i32
    return %arg0, %c0_i32 : i32, i32
  }
}

</mosaic_0001>

<llo_original>
// kernel: uniegnn_forward.2
$region0: #{uniegnn_forward.2}
  #allocation0 [shape = 'u32[]', space=smem, size = 0x4, offset = 0x4, fixed_abs, tag = 'smem constant byte address 0x4 - core index']
  #allocation1 [shape = 'u32[72,128]{1,0:T(1,128)}', space=vmem, size = 0x9000, scoped, tag = 'internal scratch']
  #allocation2 [shape = 'f32[128,128]{1,0:T(8,128)}', space=vmem, size = 0x10000, scoped, tag = 'scratch operand']
  #allocation3 [shape = 'f32[128,128]{1,0:T(8,128)}', space=vmem, size = 0x10000, scoped, tag = 'scratch operand']
  %s0 = inlined_call_operand.vmem [shape: bf16[128,128], index: 0, kind: input, shape index: {}]
  %s1 = inlined_call_operand.vmem [shape: s8[128,128], index: 1, kind: input, shape index: {}]
  %s2 = inlined_call_operand.vmem [shape: bf16[128,128], index: 2, kind: input, shape index: {}]
  %s3 = inlined_call_operand.vmem [shape: f32[128,1], index: 3, kind: input, shape index: {}]
  %s4 = inlined_call_operand.vmem [shape: f32[128,1], index: 4, kind: input, shape index: {}]
  %s5 = inlined_call_operand.vmem [shape: bf16[128,128], index: 5, kind: input, shape index: {}]
  %s6 = inlined_call_operand.vmem [shape: bf16[128,128], index: 6, kind: input, shape index: {}]
  %s7 = inlined_call_operand.vmem [shape: f32[1,128], index: 7, kind: input, shape index: {}]
  %s8 = inlined_call_operand.vmem [shape: f32[1,128], index: 8, kind: input, shape index: {}]
  %s9 = inlined_call_operand.vmem [shape: f32[1,128], index: 9, kind: input, shape index: {}]
  %s10 = inlined_call_operand.vmem [shape: f32[1,128], index: 10, kind: input, shape index: {}]
  %s11 = inlined_call_operand.vmem [shape: bf16[128,128], index: 11, kind: output, shape index: {0}]
  %s12 = inlined_call_operand.vmem [shape: bf16[128,128], index: 12, kind: output, shape index: {1}]
  %13 = xla_tuple %s11, %s12
  %s14 = sld [smem:[#allocation0]]
  $region70: #{uniegnn_forward.2} parent=0
    _
  %s16 = ssub.s32 1, %s14
  %s17 = scalar_select 0, %s16, %s14
  // Predicated region
  $region2: #{uniegnn_forward.2} parent=0 // pred_check
    _
  $region3: #{uniegnn_forward.2} parent=0 // pred_check_branch
    %19 = sbr.rel (0) target = $region5
  $region4: #{uniegnn_forward.2} parent=0 // pred_region
    _
  $region5: #{uniegnn_forward.2} parent=0 // pred_fallthru
    _
  // Predicated region
  $region6: #{uniegnn_forward.2} parent=0 // pred_check
    _
  $region7: #{uniegnn_forward.2} parent=0 // pred_check_branch
    %21 = sbr.rel (0) target = $region9
  $region8: #{uniegnn_forward.2} parent=0 // pred_region
    _
  $region9: #{uniegnn_forward.2} parent=0 // pred_fallthru
    _
  // Predicated region
  $region10: #{uniegnn_forward.2} parent=0 // pred_check
    _
  $region11: #{uniegnn_forward.2} parent=0 // pred_check_branch
    %23 = sbr.rel (0) target = $region13
  $region12: #{uniegnn_forward.2} parent=0 // pred_region
    _
  $region13: #{uniegnn_forward.2} parent=0 // pred_fallthru
    _
  // Predicated region
  $region14: #{uniegnn_forward.2} parent=0 // pred_check
    _
  $region15: #{uniegnn_forward.2} parent=0 // pred_check_branch
    %25 = sbr.rel (0) target = $region17
  $region16: #{uniegnn_forward.2} parent=0 // pred_region
    _
  $region17: #{uniegnn_forward.2} parent=0 // pred_fallthru
    _
  // Predicated region
  $region18: #{uniegnn_forward.2} parent=0 // pred_check
    _
  $region19: #{uniegnn_forward.2} parent=0 // pred_check_branch
    %27 = sbr.rel (0) target = $region21
  $region20: #{uniegnn_forward.2} parent=0 // pred_region
    _
  $region21: #{uniegnn_forward.2} parent=0 // pred_fallthru
    _
  // Predicated region
  $region22: #{uniegnn_forward.2} parent=0 // pred_check
    _
  $region23: #{uniegnn_forward.2} parent=0 // pred_check_branch
    %29 = sbr.rel (0) target = $region25
  $region24: #{uniegnn_forward.2} parent=0 // pred_region
    _
  $region25: #{uniegnn_forward.2} parent=0 // pred_fallthru
    _
  // Predicated region
  $region26: #{uniegnn_forward.2} parent=0 // pred_check
    _
  $region27: #{uniegnn_forward.2} parent=0 // pred_check_branch
    %31 = sbr.rel (0) target = $region29
  $region28: #{uniegnn_forward.2} parent=0 // pred_region
    _
  $region29: #{uniegnn_forward.2} parent=0 // pred_fallthru
    _
  // Predicated region
  $region30: #{uniegnn_forward.2} parent=0 // pred_check
    _
  $region31: #{uniegnn_forward.2} parent=0 // pred_check_branch
    %33 = sbr.rel (0) target = $region33
  $region32: #{uniegnn_forward.2} parent=0 // pred_region
    _
  $region33: #{uniegnn_forward.2} parent=0 // pred_fallthru
    _
  // Predicated region
  $region34: #{uniegnn_forward.2} parent=0 // pred_check
    _
  $region35: #{uniegnn_forward.2} parent=0 // pred_check_branch
    %35 = sbr.rel (0) target = $region37
  $region36: #{uniegnn_forward.2} parent=0 // pred_region
    _
  $region37: #{uniegnn_forward.2} parent=0 // pred_fallthru
    _
  // Predicated region
  $region38: #{uniegnn_forward.2} parent=0 // pred_check
    _
  $region39: #{uniegnn_forward.2} parent=0 // pred_check_branch
    %37 = sbr.rel (0) target = $region41
  $region40: #{uniegnn_forward.2} parent=0 // pred_region
    _
  $region41: #{uniegnn_forward.2} parent=0 // pred_fallthru
    _
  // Predicated region
  $region42: #{uniegnn_forward.2} parent=0 // pred_check
    _
  $region43: #{uniegnn_forward.2} parent=0 // pred_check_branch
    %39 = sbr.rel (0) target = $region45
  $region44: #{uniegnn_forward.2} parent=0 // pred_region
    _
  $region45: #{uniegnn_forward.2} parent=0 // pred_fallthru
    _
  %p40 = scmp.eq.s32.totalorder 0, 0
  // Predicated region
  $region46: #{uniegnn_forward.2} parent=0 // pred_check
    %p41 = pneg %p40
  $region47: #{uniegnn_forward.2} parent=0 // pred_check_branch
    %43 = sbr.rel (%p41) target = $region49
  $region48: #{uniegnn_forward.2} parent=0 // pred_region
    %44 = vst [vmem:[#allocation2] sm:$0xff] 0.0
    %45 = vst [vmem:[#allocation2 + $0x8] sm:$0xff] 0.0
    %46 = vst [vmem:[#allocation2 + $0x10] sm:$0xff] 0.0
    %47 = vst [vmem:[#allocation2 + $0x18] sm:$0xff] 0.0
    %48 = vst [vmem:[#allocation2 + $0x20] sm:$0xff] 0.0
    %49 = vst [vmem:[#allocation2 + $0x28] sm:$0xff] 0.0
    %50 = vst [vmem:[#allocation2 + $0x30] sm:$0xff] 0.0
    %51 = vst [vmem:[#allocation2 + $0x38] sm:$0xff] 0.0
    %52 = vst [vmem:[#allocation2 + $0x40] sm:$0xff] 0.0
    %53 = vst [vmem:[#allocation2 + $0x48] sm:$0xff] 0.0
    %54 = vst [vmem:[#allocation2 + $0x50] sm:$0xff] 0.0
    %55 = vst [vmem:[#allocation2 + $0x58] sm:$0xff] 0.0
    %56 = vst [vmem:[#allocation2 + $0x60] sm:$0xff] 0.0
    %57 = vst [vmem:[#allocation2 + $0x68] sm:$0xff] 0.0
    %58 = vst [vmem:[#allocation2 + $0x70] sm:$0xff] 0.0
    %59 = vst [vmem:[#allocation2 + $0x78] sm:$0xff] 0.0
    %v60 = vld [vmem:[%s2] sm:$0xf]
    %v61 = vld [vmem:[%s2 + $0x4] sm:$0xf]
    %v62 = vld [vmem:[%s2 + $0x8] sm:$0xf]
    %v63 = vld [vmem:[%s2 + $0xc] sm:$0xf]
    %v64 = vld [vmem:[%s2 + $0x10] sm:$0xf]
    %v65 = vld [vmem:[%s2 + $0x14] sm:$0xf]
    %v66 = vld [vmem:[%s2 + $0x18] sm:$0xf]
    %v67 = vld [vmem:[%s2 + $0x1c] sm:$0xf]
    %v68 = vld [vmem:[%s2 + $0x20] sm:$0xf]
    %v69 = vld [vmem:[%s2 + $0x24] sm:$0xf]
    %v70 = vld [vmem:[%s2 + $0x28] sm:$0xf]
    %v71 = vld [vmem:[%s2 + $0x2c] sm:$0xf]
    %v72 = vld [vmem:[%s2 + $0x30] sm:$0xf]
    %v73 = vld [vmem:[%s2 + $0x34] sm:$0xf]
    %v74 = vld [vmem:[%s2 + $0x38] sm:$0xf]
    %v75 = vld [vmem:[%s2 + $0x3c] sm:$0xf]
    %v76 = vld [vmem:[%s5] sm:$0xf]
    %v77 = vld [vmem:[%s5 + $0x4] sm:$0xf]
    %v78 = vld [vmem:[%s5 + $0x8] sm:$0xf]
    %v79 = vld [vmem:[%s5 + $0xc] sm:$0xf]
    %v80 = vld [vmem:[%s5 + $0x10] sm:$0xf]
    %v81 = vld [vmem:[%s5 + $0x14] sm:$0xf]
    %v82 = vld [vmem:[%s5 + $0x18] sm:$0xf]
    %v83 = vld [vmem:[%s5 + $0x1c] sm:$0xf]
    %v84 = vld [vmem:[%s5 + $0x20] sm:$0xf]
    %v85 = vld [vmem:[%s5 + $0x24] sm:$0xf]
    %v86 = vld [vmem:[%s5 + $0x28] sm:$0xf]
    %v87 = vld [vmem:[%s5 + $0x2c] sm:$0xf]
    %v88 = vld [vmem:[%s5 + $0x30] sm:$0xf]
    %v89 = vld [vmem:[%s5 + $0x34] sm:$0xf]
    %v90 = vld [vmem:[%s5 + $0x38] sm:$0xf]
    %v91 = vld [vmem:[%s5 + $0x3c] sm:$0xf]
    %v92 = vld [vmem:[%s7] sm:$0x1]
    %v94 = vperm.slane %v92, 0
    %v112 = vunpack.c.l.b16 %v60
    %v113 = vunpack.c.l.b16 %v61
    %v114 = vunpack.c.l.b16 %v62
    %v115 = vunpack.c.l.b16 %v63
    %v116 = vunpack.c.l.b16 %v64
    %v117 = vunpack.c.l.b16 %v65
    %v118 = vunpack.c.l.b16 %v66
    %v119 = vunpack.c.l.b16 %v67
    %v120 = vunpack.c.l.b16 %v68
    %v121 = vunpack.c.l.b16 %v69
    %v122 = vunpack.c.l.b16 %v70
    %v123 = vunpack.c.l.b16 %v71
    %v124 = vunpack.c.l.b16 %v72
    %v125 = vunpack.c.l.b16 %v73
    %v126 = vunpack.c.l.b16 %v74
    %v127 = vunpack.c.l.b16 %v75
    %v128 = vpack.c.b16 %v113, %v112
    %v129 = vpack.c.b16 %v115, %v114
    %v130 = vpack.c.b16 %v117, %v116
    %v131 = vpack.c.b16 %v119, %v118
    %v132 = vpack.c.b16 %v121, %v120
    %v133 = vpack.c.b16 %v123, %v122
    %v134 = vpack.c.b16 %v125, %v124
    %v135 = vpack.c.b16 %v127, %v126
    %v160 = vunpack.c.l.b16 %v76
    %v161 = vunpack.c.l.b16 %v77
    %v162 = vunpack.c.l.b16 %v78
    %v163 = vunpack.c.l.b16 %v79
    %v164 = vunpack.c.l.b16 %v80
    %v165 = vunpack.c.l.b16 %v81
    %v166 = vunpack.c.l.b16 %v82
    %v167 = vunpack.c.l.b16 %v83
    %v168 = vunpack.c.l.b16 %v84
    %v169 = vunpack.c.l.b16 %v85
    %v170 = vunpack.c.l.b16 %v86
    %v171 = vunpack.c.l.b16 %v87
    %v172 = vunpack.c.l.b16 %v88
    %v173 = vunpack.c.l.b16 %v89
    %v174 = vunpack.c.l.b16 %v90
    %v175 = vunpack.c.l.b16 %v91
    %v176 = vpack.c.b16 %v161, %v160
    %v177 = vpack.c.b16 %v163, %v162
    %v178 = vpack.c.b16 %v165, %v164
    %v179 = vpack.c.b16 %v167, %v166
    %v180 = vpack.c.b16 %v169, %v168
    %v181 = vpack.c.b16 %v171, %v170
    %v182 = vpack.c.b16 %v173, %v172
    %v183 = vpack.c.b16 %v175, %v174
    %192 = vmatpush.bf16.msra.mxu0 %v183
    %193 = vmatpush.bf16.msra.mxu0 %v182
    %194 = vmatpush.bf16.msra.mxu0 %v181
    %195 = vmatpush.bf16.msra.mxu0 %v180
    %196 = vmatpush.bf16.msra.mxu0 %v179
    %197 = vmatpush.bf16.msra.mxu0 %v178
    %198 = vmatpush.bf16.msra.mxu0 %v177
    %199 = vmatpush.bf16.msra.mxu0 %v176
    %200 = vmatmul.bf16.gmra.mxu0 %v128
    %v201 = vpop.f32.mrf.mxu0
    %v202 = vadd.f32 %v94, %v201
    %v203 = vpop.f32.mrf.mxu0
    %v204 = vadd.f32 %v94, %v203
    %205 = vmatmul.bf16.gmra.mxu0 %v129
    %v206 = vpop.f32.mrf.mxu0
    %v207 = vadd.f32 %v94, %v206
    %v208 = vpop.f32.mrf.mxu0
    %v209 = vadd.f32 %v94, %v208
    %210 = vmatmul.bf16.gmra.mxu0 %v130
    %v211 = vpop.f32.mrf.mxu0
    %v212 = vadd.f32 %v94, %v211
    %v213 = vpop.f32.mrf.mxu0
    %v214 = vadd.f32 %v94, %v213
    %215 = vmatmul.bf16.gmra.mxu0 %v131
    %v216 = vpop.f32.mrf.mxu0
    %v217 = vadd.f32 %v94, %v216
    %v218 = vpop.f32.mrf.mxu0
    %v219 = vadd.f32 %v94, %v218
    %220 = vmatmul.bf16.gmra.mxu0 %v132
    %v221 = vpop.f32.mrf.mxu0
    %v222 = vadd.f32 %v94, %v221
    %v223 = vpop.f32.mrf.mxu0
    %v224 = vadd.f32 %v94, %v223
    %225 = vmatmul.bf16.gmra.mxu0 %v133
    %v226 = vpop.f32.mrf.mxu0
    %v227 = vadd.f32 %v94, %v226
    %v228 = vpop.f32.mrf.mxu0
    %v229 = vadd.f32 %v94, %v228
    %230 = vmatmul.bf16.gmra.mxu0 %v134
    %v231 = vpop.f32.mrf.mxu0
    %v232 = vadd.f32 %v94, %v231
    %v233 = vpop.f32.mrf.mxu0
    %v234 = vadd.f32 %v94, %v233
    %235 = vmatmul.bf16.gmra.mxu0 %v135
    %v236 = vpop.f32.mrf.mxu0
    %v237 = vadd.f32 %v94, %v236
    %v238 = vpop.f32.mrf.mxu0
    %v239 = vadd.f32 %v94, %v238
    %240 = vdwg.mxu0
    %241 = vst [vmem:[#allocation3] sm:$0xff] %v202
    %242 = vst [vmem:[#allocation3 + $0x8] sm:$0xff] %v204
    %243 = vst [vmem:[#allocation3 + $0x10] sm:$0xff] %v207
    %244 = vst [vmem:[#allocation3 + $0x18] sm:$0xff] %v209
    %245 = vst [vmem:[#allocation3 + $0x20] sm:$0xff] %v212
    %246 = vst [vmem:[#allocation3 + $0x28] sm:$0xff] %v214
    %247 = vst [vmem:[#allocation3 + $0x30] sm:$0xff] %v217
    %248 = vst [vmem:[#allocation3 + $0x38] sm:$0xff] %v219
    %249 = vst [vmem:[#allocation3 + $0x40] sm:$0xff] %v222
    %250 = vst [vmem:[#allocation3 + $0x48] sm:$0xff] %v224
    %251 = vst [vmem:[#allocation3 + $0x50] sm:$0xff] %v227
    %252 = vst [vmem:[#allocation3 + $0x58] sm:$0xff] %v229
    %253 = vst [vmem:[#allocation3 + $0x60] sm:$0xff] %v232
    %254 = vst [vmem:[#allocation3 + $0x68] sm:$0xff] %v234
    %255 = vst [vmem:[#allocation3 + $0x70] sm:$0xff] %v237
    %256 = vst [vmem:[#allocation3 + $0x78] sm:$0xff] %v239
  $region49: #{uniegnn_forward.2} parent=0 // pred_fallthru
    _
  %v257 = vld [vmem:[#allocation2] sm:$0xff]
  %v258 = vld [vmem:[#allocation2 + $0x8] sm:$0xff]
  %v259 = vld [vmem:[#allocation2 + $0x10] sm:$0xff]
  %v260 = vld [vmem:[#allocation2 + $0x18] sm:$0xff]
  %v261 = vld [vmem:[#allocation2 + $0x20] sm:$0xff]
  %v262 = vld [vmem:[#allocation2 + $0x28] sm:$0xff]
  %v263 = vld [vmem:[#allocation2 + $0x30] sm:$0xff]
  %v264 = vld [vmem:[#allocation2 + $0x38] sm:$0xff]
  %v265 = vld [vmem:[#allocation2 + $0x40] sm:$0xff]
  %v266 = vld [vmem:[#allocation2 + $0x48] sm:$0xff]
  %v267 = vld [vmem:[#allocation2 + $0x50] sm:$0xff]
  %v268 = vld [vmem:[#allocation2 + $0x58] sm:$0xff]
  %v269 = vld [vmem:[#allocation2 + $0x60] sm:$0xff]
  %v270 = vld [vmem:[#allocation2 + $0x68] sm:$0xff]
  %v271 = vld [vmem:[#allocation2 + $0x70] sm:$0xff]
  %v272 = vld [vmem:[#allocation2 + $0x78] sm:$0xff]
  %v273 = vld [vmem:[%s1] sm:$0xff]
  %v274 = vld [vmem:[%s1 + $0x8] sm:$0xff]
  %v275 = vld [vmem:[%s1 + $0x10] sm:$0xff]
  %v276 = vld [vmem:[%s1 + $0x18] sm:$0xff]
  %v277 = vunpack.c.0.s8 %v273
  %v278 = vunpack.c.1.s8 %v273
  %v279 = vunpack.c.2.s8 %v273
  %v280 = vunpack.c.3.s8 %v273
  %v281 = vunpack.c.0.s8 %v274
  %v282 = vunpack.c.1.s8 %v274
  %v283 = vunpack.c.2.s8 %v274
  %v284 = vunpack.c.3.s8 %v274
  %v285 = vunpack.c.0.s8 %v275
  %v286 = vunpack.c.1.s8 %v275
  %v287 = vunpack.c.2.s8 %v275
  %v288 = vunpack.c.3.s8 %v275
  %v289 = vunpack.c.0.s8 %v276
  %v290 = vunpack.c.1.s8 %v276
  %v291 = vunpack.c.2.s8 %v276
  %v292 = vunpack.c.3.s8 %v276
  %v293 = vcvt.s32.f32 %v277
  %v294 = vcvt.s32.f32 %v278
  %v295 = vcvt.s32.f32 %v279
  %v296 = vcvt.s32.f32 %v280
  %v297 = vcvt.s32.f32 %v281
  %v298 = vcvt.s32.f32 %v282
  %v299 = vcvt.s32.f32 %v283
  %v300 = vcvt.s32.f32 %v284
  %v301 = vcvt.s32.f32 %v285
  %v302 = vcvt.s32.f32 %v286
  %v303 = vcvt.s32.f32 %v287
  %v304 = vcvt.s32.f32 %v288
  %v305 = vcvt.s32.f32 %v289
  %v306 = vcvt.s32.f32 %v290
  %v307 = vcvt.s32.f32 %v291
  %v308 = vcvt.s32.f32 %v292
  %v309 = vpack.c.bf16 %v294, %v293
  %v310 = vpack.c.bf16 %v296, %v295
  %v311 = vpack.c.bf16 %v298, %v297
  %v312 = vpack.c.bf16 %v300, %v299
  %v313 = vpack.c.bf16 %v302, %v301
  %v314 = vpack.c.bf16 %v304, %v303
  %v315 = vpack.c.bf16 %v306, %v305
  %v316 = vpack.c.bf16 %v308, %v307
  %v317 = vld [vmem:[%s0] sm:$0xf]
  %v318 = vld [vmem:[%s0 + $0x4] sm:$0xf]
  %v319 = vld [vmem:[%s0 + $0x8] sm:$0xf]
  %v320 = vld [vmem:[%s0 + $0xc] sm:$0xf]
  %v321 = vld [vmem:[%s0 + $0x10] sm:$0xf]
  %v322 = vld [vmem:[%s0 + $0x14] sm:$0xf]
  %v323 = vld [vmem:[%s0 + $0x18] sm:$0xf]
  %v324 = vld [vmem:[%s0 + $0x1c] sm:$0xf]
  %v325 = vld [vmem:[%s0 + $0x20] sm:$0xf]
  %v326 = vld [vmem:[%s0 + $0x24] sm:$0xf]
  %v327 = vld [vmem:[%s0 + $0x28] sm:$0xf]
  %v328 = vld [vmem:[%s0 + $0x2c] sm:$0xf]
  %v329 = vld [vmem:[%s0 + $0x30] sm:$0xf]
  %v330 = vld [vmem:[%s0 + $0x34] sm:$0xf]
  %v331 = vld [vmem:[%s0 + $0x38] sm:$0xf]
  %v332 = vld [vmem:[%s0 + $0x3c] sm:$0xf]
  %v349 = vunpack.c.l.b16 %v317
  %v350 = vunpack.c.l.b16 %v318
  %v351 = vunpack.c.l.b16 %v319
  %v352 = vunpack.c.l.b16 %v320
  %v353 = vunpack.c.l.b16 %v321
  %v354 = vunpack.c.l.b16 %v322
  %v355 = vunpack.c.l.b16 %v323
  %v356 = vunpack.c.l.b16 %v324
  %v357 = vunpack.c.l.b16 %v325
  %v358 = vunpack.c.l.b16 %v326
  %v359 = vunpack.c.l.b16 %v327
  %v360 = vunpack.c.l.b16 %v328
  %v361 = vunpack.c.l.b16 %v329
  %v362 = vunpack.c.l.b16 %v330
  %v363 = vunpack.c.l.b16 %v331
  %v364 = vunpack.c.l.b16 %v332
  %v365 = vpack.c.b16 %v350, %v349
  %v366 = vpack.c.b16 %v352, %v351
  %v367 = vpack.c.b16 %v354, %v353
  %v368 = vpack.c.b16 %v356, %v355
  %v369 = vpack.c.b16 %v358, %v357
  %v370 = vpack.c.b16 %v360, %v359
  %v371 = vpack.c.b16 %v362, %v361
  %v372 = vpack.c.b16 %v364, %v363
  %381 = vmatpush.bf16.msra.mxu0 %v372
  %382 = vmatpush.bf16.msra.mxu0 %v371
  %383 = vmatpush.bf16.msra.mxu0 %v370
  %384 = vmatpush.bf16.msra.mxu0 %v369
  %385 = vmatpush.bf16.msra.mxu0 %v368
  %386 = vmatpush.bf16.msra.mxu0 %v367
  %387 = vmatpush.bf16.msra.mxu0 %v366
  %388 = vmatpush.bf16.msra.mxu0 %v365
  %389 = vmatmul.bf16.gmra.mxu0 %v309
  %v390 = vpop.f32.mrf.mxu0
  %v391 = vadd.f32 0.0, %v390
  %v392 = vpop.f32.mrf.mxu0
  %v393 = vadd.f32 0.0, %v392
  %394 = vmatmul.bf16.gmra.mxu0 %v310
  %v395 = vpop.f32.mrf.mxu0
  %v396 = vadd.f32 0.0, %v395
  %v397 = vpop.f32.mrf.mxu0
  %v398 = vadd.f32 0.0, %v397
  %399 = vmatmul.bf16.gmra.mxu0 %v311
  %v400 = vpop.f32.mrf.mxu0
  %v401 = vadd.f32 0.0, %v400
  %v402 = vpop.f32.mrf.mxu0
  %v403 = vadd.f32 0.0, %v402
  %404 = vmatmul.bf16.gmra.mxu0 %v312
  %v405 = vpop.f32.mrf.mxu0
  %v406 = vadd.f32 0.0, %v405
  %v407 = vpop.f32.mrf.mxu0
  %v408 = vadd.f32 0.0, %v407
  %409 = vmatmul.bf16.gmra.mxu0 %v313
  %v410 = vpop.f32.mrf.mxu0
  %v411 = vadd.f32 0.0, %v410
  %v412 = vpop.f32.mrf.mxu0
  %v413 = vadd.f32 0.0, %v412
  %414 = vmatmul.bf16.gmra.mxu0 %v314
  %v415 = vpop.f32.mrf.mxu0
  %v416 = vadd.f32 0.0, %v415
  %v417 = vpop.f32.mrf.mxu0
  %v418 = vadd.f32 0.0, %v417
  %419 = vmatmul.bf16.gmra.mxu0 %v315
  %v420 = vpop.f32.mrf.mxu0
  %v421 = vadd.f32 0.0, %v420
  %v422 = vpop.f32.mrf.mxu0
  %v423 = vadd.f32 0.0, %v422
  %424 = vmatmul.bf16.gmra.mxu0 %v316
  %v425 = vpop.f32.mrf.mxu0
  %v426 = vadd.f32 0.0, %v425
  %v427 = vpop.f32.mrf.mxu0
  %v428 = vadd.f32 0.0, %v427
  %429 = vdwg.mxu0
  %v430 = vadd.f32 %v257, %v391
  %v431 = vadd.f32 %v258, %v393
  %v432 = vadd.f32 %v259, %v396
  %v433 = vadd.f32 %v260, %v398
  %v434 = vadd.f32 %v261, %v401
  %v435 = vadd.f32 %v262, %v403
  %v436 = vadd.f32 %v263, %v406
  %v437 = vadd.f32 %v264, %v408
  %v438 = vadd.f32 %v265, %v411
  %v439 = vadd.f32 %v266, %v413
  %v440 = vadd.f32 %v267, %v416
  %v441 = vadd.f32 %v268, %v418
  %v442 = vadd.f32 %v269, %v421
  %v443 = vadd.f32 %v270, %v423
  %v444 = vadd.f32 %v271, %v426
  %v445 = vadd.f32 %v272, %v428
  %446 = vst [vmem:[#allocation2] sm:$0xff] %v430
  %447 = vst [vmem:[#allocation2 + $0x8] sm:$0xff] %v431
  %448 = vst [vmem:[#allocation2 + $0x10] sm:$0xff] %v432
  %449 = vst [vmem:[#allocation2 + $0x18] sm:$0xff] %v433
  %450 = vst [vmem:[#allocation2 + $0x20] sm:$0xff] %v434
  %451 = vst [vmem:[#allocation2 + $0x28] sm:$0xff] %v435
  %452 = vst [vmem:[#allocation2 + $0x30] sm:$0xff] %v436
  %453 = vst [vmem:[#allocation2 + $0x38] sm:$0xff] %v437
  %454 = vst [vmem:[#allocation2 + $0x40] sm:$0xff] %v438
  %455 = vst [vmem:[#allocation2 + $0x48] sm:$0xff] %v439
  %456 = vst [vmem:[#allocation2 + $0x50] sm:$0xff] %v440
  %457 = vst [vmem:[#allocation2 + $0x58] sm:$0xff] %v441
  %458 = vst [vmem:[#allocation2 + $0x60] sm:$0xff] %v442
  %459 = vst [vmem:[#allocation2 + $0x68] sm:$0xff] %v443
  %460 = vst [vmem:[#allocation2 + $0x70] sm:$0xff] %v444
  %461 = vst [vmem:[#allocation2 + $0x78] sm:$0xff] %v445
  // Predicated region
  $region50: #{uniegnn_forward.2} parent=0 // pred_check
    %p462 = pneg %p40
  $region51: #{uniegnn_forward.2} parent=0 // pred_check_branch
    %464 = sbr.rel (%p462) target = $region53
  $region52: #{uniegnn_forward.2} parent=0 // pred_region
    %v465 = vld [vmem:[#allocation2] sm:$0xff]
    %v466 = vld [vmem:[#allocation2 + $0x8] sm:$0xff]
    %v467 = vld [vmem:[#allocation2 + $0x10] sm:$0xff]
    %v468 = vld [vmem:[#allocation2 + $0x18] sm:$0xff]
    %v469 = vld [vmem:[#allocation2 + $0x20] sm:$0xff]
    %v470 = vld [vmem:[#allocation2 + $0x28] sm:$0xff]
    %v471 = vld [vmem:[#allocation2 + $0x30] sm:$0xff]
    %v472 = vld [vmem:[#allocation2 + $0x38] sm:$0xff]
    %v473 = vld [vmem:[#allocation2 + $0x40] sm:$0xff]
    %v474 = vld [vmem:[#allocation2 + $0x48] sm:$0xff]
    %v475 = vld [vmem:[#allocation2 + $0x50] sm:$0xff]
    %v476 = vld [vmem:[#allocation2 + $0x58] sm:$0xff]
    %v477 = vld [vmem:[#allocation2 + $0x60] sm:$0xff]
    %v478 = vld [vmem:[#allocation2 + $0x68] sm:$0xff]
    %v479 = vld [vmem:[#allocation2 + $0x70] sm:$0xff]
    %v480 = vld [vmem:[#allocation2 + $0x78] sm:$0xff]
    %v481 = vld [vmem:[%s3] sm:$0xff]
    %v482 = vld [vmem:[%s3 + $0x8] sm:$0xff]
    %v483 = vld [vmem:[%s3 + $0x10] sm:$0xff]
    %v484 = vld [vmem:[%s3 + $0x18] sm:$0xff]
    %v485 = vld [vmem:[%s3 + $0x20] sm:$0xff]
    %v486 = vld [vmem:[%s3 + $0x28] sm:$0xff]
    %v487 = vld [vmem:[%s3 + $0x30] sm:$0xff]
    %v488 = vld [vmem:[%s3 + $0x38] sm:$0xff]
    %v489 = vld [vmem:[%s3 + $0x40] sm:$0xff]
    %v490 = vld [vmem:[%s3 + $0x48] sm:$0xff]
    %v491 = vld [vmem:[%s3 + $0x50] sm:$0xff]
    %v492 = vld [vmem:[%s3 + $0x58] sm:$0xff]
    %v493 = vld [vmem:[%s3 + $0x60] sm:$0xff]
    %v494 = vld [vmem:[%s3 + $0x68] sm:$0xff]
    %v495 = vld [vmem:[%s3 + $0x70] sm:$0xff]
    %v496 = vld [vmem:[%s3 + $0x78] sm:$0xff]
    %498 = vset.pattern.permute.xlu0 0
    %499 = vperm.xlu0 %498, %v481
    %v500 = vpop.permute.xlu0 %499
    %503 = vset.pattern.permute.xlu0 0
    %504 = vperm.xlu0 %503, %v482
    %v505 = vpop.permute.xlu0 %504
    %508 = vset.pattern.permute.xlu0 0
    %509 = vperm.xlu0 %508, %v483
    %v510 = vpop.permute.xlu0 %509
    %513 = vset.pattern.permute.xlu0 0
    %514 = vperm.xlu0 %513, %v484
    %v515 = vpop.permute.xlu0 %514
    %518 = vset.pattern.permute.xlu0 0
    %519 = vperm.xlu0 %518, %v485
    %v520 = vpop.permute.xlu0 %519
    %523 = vset.pattern.permute.xlu0 0
    %524 = vperm.xlu0 %523, %v486
    %v525 = vpop.permute.xlu0 %524
    %528 = vset.pattern.permute.xlu0 0
    %529 = vperm.xlu0 %528, %v487
    %v530 = vpop.permute.xlu0 %529
    %533 = vset.pattern.permute.xlu0 0
    %534 = vperm.xlu0 %533, %v488
    %v535 = vpop.permute.xlu0 %534
    %538 = vset.pattern.permute.xlu0 0
    %539 = vperm.xlu0 %538, %v489
    %v540 = vpop.permute.xlu0 %539
    %543 = vset.pattern.permute.xlu0 0
    %544 = vperm.xlu0 %543, %v490
    %v545 = vpop.permute.xlu0 %544
    %548 = vset.pattern.permute.xlu0 0
    %549 = vperm.xlu0 %548, %v491
    %v550 = vpop.permute.xlu0 %549
    %553 = vset.pattern.permute.xlu0 0
    %554 = vperm.xlu0 %553, %v492
    %v555 = vpop.permute.xlu0 %554
    %558 = vset.pattern.permute.xlu0 0
    %559 = vperm.xlu0 %558, %v493
    %v560 = vpop.permute.xlu0 %559
    %563 = vset.pattern.permute.xlu0 0
    %564 = vperm.xlu0 %563, %v494
    %v565 = vpop.permute.xlu0 %564
    %568 = vset.pattern.permute.xlu0 0
    %569 = vperm.xlu0 %568, %v495
    %v570 = vpop.permute.xlu0 %569
    %573 = vset.pattern.permute.xlu0 0
    %574 = vperm.xlu0 %573, %v496
    %v575 = vpop.permute.xlu0 %574
    %v577 = vmul.f32 %v465, %v500
    %v578 = vmul.f32 %v466, %v505
    %v579 = vmul.f32 %v467, %v510
    %v580 = vmul.f32 %v468, %v515
    %v581 = vmul.f32 %v469, %v520
    %v582 = vmul.f32 %v470, %v525
    %v583 = vmul.f32 %v471, %v530
    %v584 = vmul.f32 %v472, %v535
    %v585 = vmul.f32 %v473, %v540
    %v586 = vmul.f32 %v474, %v545
    %v587 = vmul.f32 %v475, %v550
    %v588 = vmul.f32 %v476, %v555
    %v589 = vmul.f32 %v477, %v560
    %v590 = vmul.f32 %v478, %v565
    %v591 = vmul.f32 %v479, %v570
    %v592 = vmul.f32 %v480, %v575
    %v593 = vpack.c.bf16 %v578, %v577
    %v594 = vpack.c.bf16 %v580, %v579
    %v595 = vpack.c.bf16 %v582, %v581
    %v596 = vpack.c.bf16 %v584, %v583
    %v597 = vpack.c.bf16 %v586, %v585
    %v598 = vpack.c.bf16 %v588, %v587
    %v599 = vpack.c.bf16 %v590, %v589
    %v600 = vpack.c.bf16 %v592, %v591
    %v601 = vld [vmem:[#allocation3] sm:$0xff]
    %v602 = vld [vmem:[#allocation3 + $0x8] sm:$0xff]
    %v603 = vld [vmem:[#allocation3 + $0x10] sm:$0xff]
    %v604 = vld [vmem:[#allocation3 + $0x18] sm:$0xff]
    %v605 = vld [vmem:[#allocation3 + $0x20] sm:$0xff]
    %v606 = vld [vmem:[#allocation3 + $0x28] sm:$0xff]
    %v607 = vld [vmem:[#allocation3 + $0x30] sm:$0xff]
    %v608 = vld [vmem:[#allocation3 + $0x38] sm:$0xff]
    %v609 = vld [vmem:[#allocation3 + $0x40] sm:$0xff]
    %v610 = vld [vmem:[#allocation3 + $0x48] sm:$0xff]
    %v611 = vld [vmem:[#allocation3 + $0x50] sm:$0xff]
    %v612 = vld [vmem:[#allocation3 + $0x58] sm:$0xff]
    %v613 = vld [vmem:[#allocation3 + $0x60] sm:$0xff]
    %v614 = vld [vmem:[#allocation3 + $0x68] sm:$0xff]
    %v615 = vld [vmem:[#allocation3 + $0x70] sm:$0xff]
    %v616 = vld [vmem:[#allocation3 + $0x78] sm:$0xff]
    %v617 = vld [vmem:[%s6] sm:$0xf]
    %v618 = vld [vmem:[%s6 + $0x4] sm:$0xf]
    %v619 = vld [vmem:[%s6 + $0x8] sm:$0xf]
    %v620 = vld [vmem:[%s6 + $0xc] sm:$0xf]
    %v621 = vld [vmem:[%s6 + $0x10] sm:$0xf]
    %v622 = vld [vmem:[%s6 + $0x14] sm:$0xf]
    %v623 = vld [vmem:[%s6 + $0x18] sm:$0xf]
    %v624 = vld [vmem:[%s6 + $0x1c] sm:$0xf]
    %v625 = vld [vmem:[%s6 + $0x20] sm:$0xf]
    %v626 = vld [vmem:[%s6 + $0x24] sm:$0xf]
    %v627 = vld [vmem:[%s6 + $0x28] sm:$0xf]
    %v628 = vld [vmem:[%s6 + $0x2c] sm:$0xf]
    %v629 = vld [vmem:[%s6 + $0x30] sm:$0xf]
    %v630 = vld [vmem:[%s6 + $0x34] sm:$0xf]
    %v631 = vld [vmem:[%s6 + $0x38] sm:$0xf]
    %v632 = vld [vmem:[%s6 + $0x3c] sm:$0xf]
    %v649 = vunpack.c.l.b16 %v617
    %v650 = vunpack.c.l.b16 %v618
    %v651 = vunpack.c.l.b16 %v619
    %v652 = vunpack.c.l.b16 %v620
    %v653 = vunpack.c.l.b16 %v621
    %v654 = vunpack.c.l.b16 %v622
    %v655 = vunpack.c.l.b16 %v623
    %v656 = vunpack.c.l.b16 %v624
    %v657 = vunpack.c.l.b16 %v625
    %v658 = vunpack.c.l.b16 %v626
    %v659 = vunpack.c.l.b16 %v627
    %v660 = vunpack.c.l.b16 %v628
    %v661 = vunpack.c.l.b16 %v629
    %v662 = vunpack.c.l.b16 %v630
    %v663 = vunpack.c.l.b16 %v631
    %v664 = vunpack.c.l.b16 %v632
    %v665 = vpack.c.b16 %v650, %v649
    %v666 = vpack.c.b16 %v652, %v651
    %v667 = vpack.c.b16 %v654, %v653
    %v668 = vpack.c.b16 %v656, %v655
    %v669 = vpack.c.b16 %v658, %v657
    %v670 = vpack.c.b16 %v660, %v659
    %v671 = vpack.c.b16 %v662, %v661
    %v672 = vpack.c.b16 %v664, %v663
    %681 = vmatpush.bf16.msra.mxu0 %v672
    %682 = vmatpush.bf16.msra.mxu0 %v671
    %683 = vmatpush.bf16.msra.mxu0 %v670
    %684 = vmatpush.bf16.msra.mxu0 %v669
    %685 = vmatpush.bf16.msra.mxu0 %v668
    %686 = vmatpush.bf16.msra.mxu0 %v667
    %687 = vmatpush.bf16.msra.mxu0 %v666
    %688 = vmatpush.bf16.msra.mxu0 %v665
    %689 = vmatmul.bf16.gmra.mxu0 %v593
    %v690 = vpop.f32.mrf.mxu0
    %v691 = vadd.f32 0.0, %v690
    %v692 = vpop.f32.mrf.mxu0
    %v693 = vadd.f32 0.0, %v692
    %694 = vmatmul.bf16.gmra.mxu0 %v594
    %v695 = vpop.f32.mrf.mxu0
    %v696 = vadd.f32 0.0, %v695
    %v697 = vpop.f32.mrf.mxu0
    %v698 = vadd.f32 0.0, %v697
    %699 = vmatmul.bf16.gmra.mxu0 %v595
    %v700 = vpop.f32.mrf.mxu0
    %v701 = vadd.f32 0.0, %v700
    %v702 = vpop.f32.mrf.mxu0
    %v703 = vadd.f32 0.0, %v702
    %704 = vmatmul.bf16.gmra.mxu0 %v596
    %v705 = vpop.f32.mrf.mxu0
    %v706 = vadd.f32 0.0, %v705
    %v707 = vpop.f32.mrf.mxu0
    %v708 = vadd.f32 0.0, %v707
    %709 = vmatmul.bf16.gmra.mxu0 %v597
    %v710 = vpop.f32.mrf.mxu0
    %v711 = vadd.f32 0.0, %v710
    %v712 = vpop.f32.mrf.mxu0
    %v713 = vadd.f32 0.0, %v712
    %714 = vmatmul.bf16.gmra.mxu0 %v598
    %v715 = vpop.f32.mrf.mxu0
    %v716 = vadd.f32 0.0, %v715
    %v717 = vpop.f32.mrf.mxu0
    %v718 = vadd.f32 0.0, %v717
    %719 = vmatmul.bf16.gmra.mxu0 %v599
    %v720 = vpop.f32.mrf.mxu0
    %v721 = vadd.f32 0.0, %v720
    %v722 = vpop.f32.mrf.mxu0
    %v723 = vadd.f32 0.0, %v722
    %724 = vmatmul.bf16.gmra.mxu0 %v600
    %v725 = vpop.f32.mrf.mxu0
    %v726 = vadd.f32 0.0, %v725
    %v727 = vpop.f32.mrf.mxu0
    %v728 = vadd.f32 0.0, %v727
    %729 = vdwg.mxu0
    %v730 = vadd.f32 %v601, %v691
    %v731 = vadd.f32 %v602, %v693
    %v732 = vadd.f32 %v603, %v696
    %v733 = vadd.f32 %v604, %v698
    %v734 = vadd.f32 %v605, %v701
    %v735 = vadd.f32 %v606, %v703
    %v736 = vadd.f32 %v607, %v706
    %v737 = vadd.f32 %v608, %v708
    %v738 = vadd.f32 %v609, %v711
    %v739 = vadd.f32 %v610, %v713
    %v740 = vadd.f32 %v611, %v716
    %v741 = vadd.f32 %v612, %v718
    %v742 = vadd.f32 %v613, %v721
    %v743 = vadd.f32 %v614, %v723
    %v744 = vadd.f32 %v615, %v726
    %v745 = vadd.f32 %v616, %v728
    %v746 = vld [vmem:[%s4] sm:$0xff]
    %v747 = vld [vmem:[%s4 + $0x8] sm:$0xff]
    %v748 = vld [vmem:[%s4 + $0x10] sm:$0xff]
    %v749 = vld [vmem:[%s4 + $0x18] sm:$0xff]
    %v750 = vld [vmem:[%s4 + $0x20] sm:$0xff]
    %v751 = vld [vmem:[%s4 + $0x28] sm:$0xff]
    %v752 = vld [vmem:[%s4 + $0x30] sm:$0xff]
    %v753 = vld [vmem:[%s4 + $0x38] sm:$0xff]
    %v754 = vld [vmem:[%s4 + $0x40] sm:$0xff]
    %v755 = vld [vmem:[%s4 + $0x48] sm:$0xff]
    %v756 = vld [vmem:[%s4 + $0x50] sm:$0xff]
    %v757 = vld [vmem:[%s4 + $0x58] sm:$0xff]
    %v758 = vld [vmem:[%s4 + $0x60] sm:$0xff]
    %v759 = vld [vmem:[%s4 + $0x68] sm:$0xff]
    %v760 = vld [vmem:[%s4 + $0x70] sm:$0xff]
    %v761 = vld [vmem:[%s4 + $0x78] sm:$0xff]
    %v762 = vld [vmem:[%s8] sm:$0x1]
    %764 = vset.pattern.permute.xlu0 0
    %765 = vperm.xlu0 %764, %v746
    %v766 = vpop.permute.xlu0 %765
    %769 = vset.pattern.permute.xlu0 0
    %770 = vperm.xlu0 %769, %v747
    %v771 = vpop.permute.xlu0 %770
    %774 = vset.pattern.permute.xlu0 0
    %775 = vperm.xlu0 %774, %v748
    %v776 = vpop.permute.xlu0 %775
    %779 = vset.pattern.permute.xlu0 0
    %780 = vperm.xlu0 %779, %v749
    %v781 = vpop.permute.xlu0 %780
    %784 = vset.pattern.permute.xlu0 0
    %785 = vperm.xlu0 %784, %v750
    %v786 = vpop.permute.xlu0 %785
    %789 = vset.pattern.permute.xlu0 0
    %790 = vperm.xlu0 %789, %v751
    %v791 = vpop.permute.xlu0 %790
    %794 = vset.pattern.permute.xlu0 0
    %795 = vperm.xlu0 %794, %v752
    %v796 = vpop.permute.xlu0 %795
    %799 = vset.pattern.permute.xlu0 0
    %800 = vperm.xlu0 %799, %v753
    %v801 = vpop.permute.xlu0 %800
    %804 = vset.pattern.permute.xlu0 0
    %805 = vperm.xlu0 %804, %v754
    %v806 = vpop.permute.xlu0 %805
    %809 = vset.pattern.permute.xlu0 0
    %810 = vperm.xlu0 %809, %v755
    %v811 = vpop.permute.xlu0 %810
    %814 = vset.pattern.permute.xlu0 0
    %815 = vperm.xlu0 %814, %v756
    %v816 = vpop.permute.xlu0 %815
    %819 = vset.pattern.permute.xlu0 0
    %820 = vperm.xlu0 %819, %v757
    %v821 = vpop.permute.xlu0 %820
    %824 = vset.pattern.permute.xlu0 0
    %825 = vperm.xlu0 %824, %v758
    %v826 = vpop.permute.xlu0 %825
    %829 = vset.pattern.permute.xlu0 0
    %830 = vperm.xlu0 %829, %v759
    %v831 = vpop.permute.xlu0 %830
    %834 = vset.pattern.permute.xlu0 0
    %835 = vperm.xlu0 %834, %v760
    %v836 = vpop.permute.xlu0 %835
    %839 = vset.pattern.permute.xlu0 0
    %840 = vperm.xlu0 %839, %v761
    %v841 = vpop.permute.xlu0 %840
    %v844 = vperm.slane %v762, 0
    %v846 = vmul.f32 %v766, %v844
    %v847 = vmul.f32 %v771, %v844
    %v848 = vmul.f32 %v776, %v844
    %v849 = vmul.f32 %v781, %v844
    %v850 = vmul.f32 %v786, %v844
    %v851 = vmul.f32 %v791, %v844
    %v852 = vmul.f32 %v796, %v844
    %v853 = vmul.f32 %v801, %v844
    %v854 = vmul.f32 %v806, %v844
    %v855 = vmul.f32 %v811, %v844
    %v856 = vmul.f32 %v816, %v844
    %v857 = vmul.f32 %v821, %v844
    %v858 = vmul.f32 %v826, %v844
    %v859 = vmul.f32 %v831, %v844
    %v860 = vmul.f32 %v836, %v844
    %v861 = vmul.f32 %v841, %v844
    %v862 = vadd.f32 %v730, %v846
    %v863 = vadd.f32 %v731, %v847
    %v864 = vadd.f32 %v732, %v848
    %v865 = vadd.f32 %v733, %v849
    %v866 = vadd.f32 %v734, %v850
    %v867 = vadd.f32 %v735, %v851
    %v868 = vadd.f32 %v736, %v852
    %v869 = vadd.f32 %v737, %v853
    %v870 = vadd.f32 %v738, %v854
    %v871 = vadd.f32 %v739, %v855
    %v872 = vadd.f32 %v740, %v856
    %v873 = vadd.f32 %v741, %v857
    %v874 = vadd.f32 %v742, %v858
    %v875 = vadd.f32 %v743, %v859
    %v876 = vadd.f32 %v744, %v860
    %v877 = vadd.f32 %v745, %v861
    %v878 = vpack.c.bf16 %v862, %v862
    %v879 = vpack.c.bf16 %v863, %v863
    %v880 = vpack.c.bf16 %v864, %v864
    %v881 = vpack.c.bf16 %v865, %v865
    %v882 = vpack.c.bf16 %v866, %v866
    %v883 = vpack.c.bf16 %v867, %v867
    %v884 = vpack.c.bf16 %v868, %v868
    %v885 = vpack.c.bf16 %v869, %v869
    %v886 = vpack.c.bf16 %v870, %v870
    %v887 = vpack.c.bf16 %v871, %v871
    %v888 = vpack.c.bf16 %v872, %v872
    %v889 = vpack.c.bf16 %v873, %v873
    %v890 = vpack.c.bf16 %v874, %v874
    %v891 = vpack.c.bf16 %v875, %v875
    %v892 = vpack.c.bf16 %v876, %v876
    %v893 = vpack.c.bf16 %v877, %v877
    %894 = vst [vmem:[%s11] sm:$0xf] %v878
    %895 = vst [vmem:[%s11 + $0x4] sm:$0xf] %v879
    %896 = vst [vmem:[%s11 + $0x8] sm:$0xf] %v880
    %897 = vst [vmem:[%s11 + $0xc] sm:$0xf] %v881
    %898 = vst [vmem:[%s11 + $0x10] sm:$0xf] %v882
    %899 = vst [vmem:[%s11 + $0x14] sm:$0xf] %v883
    %900 = vst [vmem:[%s11 + $0x18] sm:$0xf] %v884
    %901 = vst [vmem:[%s11 + $0x1c] sm:$0xf] %v885
    %902 = vst [vmem:[%s11 + $0x20] sm:$0xf] %v886
    %903 = vst [vmem:[%s11 + $0x24] sm:$0xf] %v887
    %904 = vst [vmem:[%s11 + $0x28] sm:$0xf] %v888
    %905 = vst [vmem:[%s11 + $0x2c] sm:$0xf] %v889
    %906 = vst [vmem:[%s11 + $0x30] sm:$0xf] %v890
    %907 = vst [vmem:[%s11 + $0x34] sm:$0xf] %v891
    %908 = vst [vmem:[%s11 + $0x38] sm:$0xf] %v892
    %909 = vst [vmem:[%s11 + $0x3c] sm:$0xf] %v893
    %v910 = vld [vmem:[%s9] sm:$0x1]
    %v911 = vld [vmem:[%s10] sm:$0x1]
    %912 = vadd.xlane.f32.xlu0 %v862
    %v913 = vpop.xlane.xlu0 %912
    %914 = vadd.xlane.f32.xlu0 %v863
    %v915 = vpop.xlane.xlu0 %914
    %916 = vadd.xlane.f32.xlu0 %v864
    %v917 = vpop.xlane.xlu0 %916
    %918 = vadd.xlane.f32.xlu0 %v865
    %v919 = vpop.xlane.xlu0 %918
    %920 = vadd.xlane.f32.xlu0 %v866
    %v921 = vpop.xlane.xlu0 %920
    %922 = vadd.xlane.f32.xlu0 %v867
    %v923 = vpop.xlane.xlu0 %922
    %924 = vadd.xlane.f32.xlu0 %v868
    %v925 = vpop.xlane.xlu0 %924
    %926 = vadd.xlane.f32.xlu0 %v869
    %v927 = vpop.xlane.xlu0 %926
    %928 = vadd.xlane.f32.xlu0 %v870
    %v929 = vpop.xlane.xlu0 %928
    %930 = vadd.xlane.f32.xlu0 %v871
    %v931 = vpop.xlane.xlu0 %930
    %932 = vadd.xlane.f32.xlu0 %v872
    %v933 = vpop.xlane.xlu0 %932
    %934 = vadd.xlane.f32.xlu0 %v873
    %v935 = vpop.xlane.xlu0 %934
    %936 = vadd.xlane.f32.xlu0 %v874
    %v937 = vpop.xlane.xlu0 %936
    %938 = vadd.xlane.f32.xlu0 %v875
    %v939 = vpop.xlane.xlu0 %938
    %940 = vadd.xlane.f32.xlu0 %v876
    %v941 = vpop.xlane.xlu0 %940
    %942 = vadd.xlane.f32.xlu0 %v877
    %v943 = vpop.xlane.xlu0 %942
    %v944 = vmul.f32 %v913, 0.03125
    %v945 = vmul.f32 %v915, 0.03125
    %v946 = vmul.f32 %v917, 0.03125
    %v947 = vmul.f32 %v919, 0.03125
    %v948 = vmul.f32 %v921, 0.03125
    %v949 = vmul.f32 %v923, 0.03125
    %v950 = vmul.f32 %v925, 0.03125
    %v951 = vmul.f32 %v927, 0.03125
    %v952 = vmul.f32 %v929, 0.03125
    %v953 = vmul.f32 %v931, 0.03125
    %v954 = vmul.f32 %v933, 0.03125
    %v955 = vmul.f32 %v935, 0.03125
    %v956 = vmul.f32 %v937, 0.03125
    %v957 = vmul.f32 %v939, 0.03125
    %v958 = vmul.f32 %v941, 0.03125
    %v959 = vmul.f32 %v943, 0.03125
    %v960 = vsub.f32 %v862, %v944
    %v961 = vsub.f32 %v863, %v945
    %v962 = vsub.f32 %v864, %v946
    %v963 = vsub.f32 %v865, %v947
    %v964 = vsub.f32 %v866, %v948
    %v965 = vsub.f32 %v867, %v949
    %v966 = vsub.f32 %v868, %v950
    %v967 = vsub.f32 %v869, %v951
    %v968 = vsub.f32 %v870, %v952
    %v969 = vsub.f32 %v871, %v953
    %v970 = vsub.f32 %v872, %v954
    %v971 = vsub.f32 %v873, %v955
    %v972 = vsub.f32 %v874, %v956
    %v973 = vsub.f32 %v875, %v957
    %v974 = vsub.f32 %v876, %v958
    %v975 = vsub.f32 %v877, %v959
    %v976 = vlaneseq
    %v977 = vand.u32 %v976, 127
    %vm978 = vcmp.lt.s32.totalorder %v977, 32
    %v979 = vsel %vm978, 1, 0
    %vm980 = vcmp.eq.s32.totalorder %v979, 1
    %v981 = vsel %vm980, %v960, 0.0
    %v982 = vsel %vm980, %v961, 0.0
    %v983 = vsel %vm980, %v962, 0.0
    %v984 = vsel %vm980, %v963, 0.0
    %v985 = vsel %vm980, %v964, 0.0
    %v986 = vsel %vm980, %v965, 0.0
    %v987 = vsel %vm980, %v966, 0.0
    %v988 = vsel %vm980, %v967, 0.0
    %v989 = vsel %vm980, %v968, 0.0
    %v990 = vsel %vm980, %v969, 0.0
    %v991 = vsel %vm980, %v970, 0.0
    %v992 = vsel %vm980, %v971, 0.0
    %v993 = vsel %vm980, %v972, 0.0
    %v994 = vsel %vm980, %v973, 0.0
    %v995 = vsel %vm980, %v974, 0.0
    %v996 = vsel %vm980, %v975, 0.0
    %v997 = vmul.f32 %v981, %v981
    %v998 = vmul.f32 %v982, %v982
    %v999 = vmul.f32 %v983, %v983
    %v1000 = vmul.f32 %v984, %v984
    %v1001 = vmul.f32 %v985, %v985
    %v1002 = vmul.f32 %v986, %v986
    %v1003 = vmul.f32 %v987, %v987
    %v1004 = vmul.f32 %v988, %v988
    %v1005 = vmul.f32 %v989, %v989
    %v1006 = vmul.f32 %v990, %v990
    %v1007 = vmul.f32 %v991, %v991
    %v1008 = vmul.f32 %v992, %v992
    %v1009 = vmul.f32 %v993, %v993
    %v1010 = vmul.f32 %v994, %v994
    %v1011 = vmul.f32 %v995, %v995
    %v1012 = vmul.f32 %v996, %v996
    %1013 = vadd.xlane.f32.xlu0 %v997
    %v1014 = vpop.xlane.xlu0 %1013
    %1015 = vadd.xlane.f32.xlu0 %v998
    %v1016 = vpop.xlane.xlu0 %1015
    %1017 = vadd.xlane.f32.xlu0 %v999
    %v1018 = vpop.xlane.xlu0 %1017
    %1019 = vadd.xlane.f32.xlu0 %v1000
    %v1020 = vpop.xlane.xlu0 %1019
    %1021 = vadd.xlane.f32.xlu0 %v1001
    %v1022 = vpop.xlane.xlu0 %1021
    %1023 = vadd.xlane.f32.xlu0 %v1002
    %v1024 = vpop.xlane.xlu0 %1023
    %1025 = vadd.xlane.f32.xlu0 %v1003
    %v1026 = vpop.xlane.xlu0 %1025
    %1027 = vadd.xlane.f32.xlu0 %v1004
    %v1028 = vpop.xlane.xlu0 %1027
    %1029 = vadd.xlane.f32.xlu0 %v1005
    %v1030 = vpop.xlane.xlu0 %1029
    %1031 = vadd.xlane.f32.xlu0 %v1006
    %v1032 = vpop.xlane.xlu0 %1031
    %1033 = vadd.xlane.f32.xlu0 %v1007
    %v1034 = vpop.xlane.xlu0 %1033
    %1035 = vadd.xlane.f32.xlu0 %v1008
    %v1036 = vpop.xlane.xlu0 %1035
    %1037 = vadd.xlane.f32.xlu0 %v1009
    %v1038 = vpop.xlane.xlu0 %1037
    %1039 = vadd.xlane.f32.xlu0 %v1010
    %v1040 = vpop.xlane.xlu0 %1039
    %1041 = vadd.xlane.f32.xlu0 %v1011
    %v1042 = vpop.xlane.xlu0 %1041
    %1043 = vadd.xlane.f32.xlu0 %v1012
    %v1044 = vpop.xlane.xlu0 %1043
    %v1045 = vmul.f32 %v1014, 0.03125
    %v1046 = vmul.f32 %v1016, 0.03125
    %v1047 = vmul.f32 %v1018, 0.03125
    %v1048 = vmul.f32 %v1020, 0.03125
    %v1049 = vmul.f32 %v1022, 0.03125
    %v1050 = vmul.f32 %v1024, 0.03125
    %v1051 = vmul.f32 %v1026, 0.03125
    %v1052 = vmul.f32 %v1028, 0.03125
    %v1053 = vmul.f32 %v1030, 0.03125
    %v1054 = vmul.f32 %v1032, 0.03125
    %v1055 = vmul.f32 %v1034, 0.03125
    %v1056 = vmul.f32 %v1036, 0.03125
    %v1057 = vmul.f32 %v1038, 0.03125
    %v1058 = vmul.f32 %v1040, 0.03125
    %v1059 = vmul.f32 %v1042, 0.03125
    %v1060 = vmul.f32 %v1044, 0.03125
    %v1061 = vadd.f32 %v1045, 1e-05
    %v1062 = vadd.f32 %v1046, 1e-05
    %v1063 = vadd.f32 %v1047, 1e-05
    %v1064 = vadd.f32 %v1048, 1e-05
    %v1065 = vadd.f32 %v1049, 1e-05
    %v1066 = vadd.f32 %v1050, 1e-05
    %v1067 = vadd.f32 %v1051, 1e-05
    %v1068 = vadd.f32 %v1052, 1e-05
    %v1069 = vadd.f32 %v1053, 1e-05
    %v1070 = vadd.f32 %v1054, 1e-05
    %v1071 = vadd.f32 %v1055, 1e-05
    %v1072 = vadd.f32 %v1056, 1e-05
    %v1073 = vadd.f32 %v1057, 1e-05
    %v1074 = vadd.f32 %v1058, 1e-05
    %v1075 = vadd.f32 %v1059, 1e-05
    %v1076 = vadd.f32 %v1060, 1e-05
    %v1077 = vrsqrt.pop %v1061
    %v1078 = vmul.f32 %v1077, %v1061
    %v1079 = vmul.f32 %v1078, %v1077
    %v1080 = vmul.f32 0.5, %v1079
    %v1081 = vsub.f32 1.5, %v1080
    %v1082 = vmul.f32 %v1077, %v1081
    %vm1083 = vweird.f32 %v1061
    %vm1084 = vweird.f32 %v1077
    %vm1085 = vmor %vm1083, %vm1084
    %v1086 = vsel %vm1085, %v1077, %v1082
    %v1087 = vrsqrt.pop %v1062
    %v1088 = vmul.f32 %v1087, %v1062
    %v1089 = vmul.f32 %v1088, %v1087
    %v1090 = vmul.f32 0.5, %v1089
    %v1091 = vsub.f32 1.5, %v1090
    %v1092 = vmul.f32 %v1087, %v1091
    %vm1093 = vweird.f32 %v1062
    %vm1094 = vweird.f32 %v1087
    %vm1095 = vmor %vm1093, %vm1094
    %v1096 = vsel %vm1095, %v1087, %v1092
    %v1097 = vrsqrt.pop %v1063
    %v1098 = vmul.f32 %v1097, %v1063
    %v1099 = vmul.f32 %v1098, %v1097
    %v1100 = vmul.f32 0.5, %v1099
    %v1101 = vsub.f32 1.5, %v1100
    %v1102 = vmul.f32 %v1097, %v1101
    %vm1103 = vweird.f32 %v1063
    %vm1104 = vweird.f32 %v1097
    %vm1105 = vmor %vm1103, %vm1104
    %v1106 = vsel %vm1105, %v1097, %v1102
    %v1107 = vrsqrt.pop %v1064
    %v1108 = vmul.f32 %v1107, %v1064
    %v1109 = vmul.f32 %v1108, %v1107
    %v1110 = vmul.f32 0.5, %v1109
    %v1111 = vsub.f32 1.5, %v1110
    %v1112 = vmul.f32 %v1107, %v1111
    %vm1113 = vweird.f32 %v1064
    %vm1114 = vweird.f32 %v1107
    %vm1115 = vmor %vm1113, %vm1114
    %v1116 = vsel %vm1115, %v1107, %v1112
    %v1117 = vrsqrt.pop %v1065
    %v1118 = vmul.f32 %v1117, %v1065
    %v1119 = vmul.f32 %v1118, %v1117
    %v1120 = vmul.f32 0.5, %v1119
    %v1121 = vsub.f32 1.5, %v1120
    %v1122 = vmul.f32 %v1117, %v1121
    %vm1123 = vweird.f32 %v1065
    %vm1124 = vweird.f32 %v1117
    %vm1125 = vmor %vm1123, %vm1124
    %v1126 = vsel %vm1125, %v1117, %v1122
    %v1127 = vrsqrt.pop %v1066
    %v1128 = vmul.f32 %v1127, %v1066
    %v1129 = vmul.f32 %v1128, %v1127
    %v1130 = vmul.f32 0.5, %v1129
    %v1131 = vsub.f32 1.5, %v1130
    %v1132 = vmul.f32 %v1127, %v1131
    %vm1133 = vweird.f32 %v1066
    %vm1134 = vweird.f32 %v1127
    %vm1135 = vmor %vm1133, %vm1134
    %v1136 = vsel %vm1135, %v1127, %v1132
    %v1137 = vrsqrt.pop %v1067
    %v1138 = vmul.f32 %v1137, %v1067
    %v1139 = vmul.f32 %v1138, %v1137
    %v1140 = vmul.f32 0.5, %v1139
    %v1141 = vsub.f32 1.5, %v1140
    %v1142 = vmul.f32 %v1137, %v1141
    %vm1143 = vweird.f32 %v1067
    %vm1144 = vweird.f32 %v1137
    %vm1145 = vmor %vm1143, %vm1144
    %v1146 = vsel %vm1145, %v1137, %v1142
    %v1147 = vrsqrt.pop %v1068
    %v1148 = vmul.f32 %v1147, %v1068
    %v1149 = vmul.f32 %v1148, %v1147
    %v1150 = vmul.f32 0.5, %v1149
    %v1151 = vsub.f32 1.5, %v1150
    %v1152 = vmul.f32 %v1147, %v1151
    %vm1153 = vweird.f32 %v1068
    %vm1154 = vweird.f32 %v1147
    %vm1155 = vmor %vm1153, %vm1154
    %v1156 = vsel %vm1155, %v1147, %v1152
    %v1157 = vrsqrt.pop %v1069
    %v1158 = vmul.f32 %v1157, %v1069
    %v1159 = vmul.f32 %v1158, %v1157
    %v1160 = vmul.f32 0.5, %v1159
    %v1161 = vsub.f32 1.5, %v1160
    %v1162 = vmul.f32 %v1157, %v1161
    %vm1163 = vweird.f32 %v1069
    %vm1164 = vweird.f32 %v1157
    %vm1165 = vmor %vm1163, %vm1164
    %v1166 = vsel %vm1165, %v1157, %v1162
    %v1167 = vrsqrt.pop %v1070
    %v1168 = vmul.f32 %v1167, %v1070
    %v1169 = vmul.f32 %v1168, %v1167
    %v1170 = vmul.f32 0.5, %v1169
    %v1171 = vsub.f32 1.5, %v1170
    %v1172 = vmul.f32 %v1167, %v1171
    %vm1173 = vweird.f32 %v1070
    %vm1174 = vweird.f32 %v1167
    %vm1175 = vmor %vm1173, %vm1174
    %v1176 = vsel %vm1175, %v1167, %v1172
    %v1177 = vrsqrt.pop %v1071
    %v1178 = vmul.f32 %v1177, %v1071
    %v1179 = vmul.f32 %v1178, %v1177
    %v1180 = vmul.f32 0.5, %v1179
    %v1181 = vsub.f32 1.5, %v1180
    %v1182 = vmul.f32 %v1177, %v1181
    %vm1183 = vweird.f32 %v1071
    %vm1184 = vweird.f32 %v1177
    %vm1185 = vmor %vm1183, %vm1184
    %v1186 = vsel %vm1185, %v1177, %v1182
    %v1187 = vrsqrt.pop %v1072
    %v1188 = vmul.f32 %v1187, %v1072
    %v1189 = vmul.f32 %v1188, %v1187
    %v1190 = vmul.f32 0.5, %v1189
    %v1191 = vsub.f32 1.5, %v1190
    %v1192 = vmul.f32 %v1187, %v1191
    %vm1193 = vweird.f32 %v1072
    %vm1194 = vweird.f32 %v1187
    %vm1195 = vmor %vm1193, %vm1194
    %v1196 = vsel %vm1195, %v1187, %v1192
    %v1197 = vrsqrt.pop %v1073
    %v1198 = vmul.f32 %v1197, %v1073
    %v1199 = vmul.f32 %v1198, %v1197
    %v1200 = vmul.f32 0.5, %v1199
    %v1201 = vsub.f32 1.5, %v1200
    %v1202 = vmul.f32 %v1197, %v1201
    %vm1203 = vweird.f32 %v1073
    %vm1204 = vweird.f32 %v1197
    %vm1205 = vmor %vm1203, %vm1204
    %v1206 = vsel %vm1205, %v1197, %v1202
    %v1207 = vrsqrt.pop %v1074
    %v1208 = vmul.f32 %v1207, %v1074
    %v1209 = vmul.f32 %v1208, %v1207
    %v1210 = vmul.f32 0.5, %v1209
    %v1211 = vsub.f32 1.5, %v1210
    %v1212 = vmul.f32 %v1207, %v1211
    %vm1213 = vweird.f32 %v1074
    %vm1214 = vweird.f32 %v1207
    %vm1215 = vmor %vm1213, %vm1214
    %v1216 = vsel %vm1215, %v1207, %v1212
    %v1217 = vrsqrt.pop %v1075
    %v1218 = vmul.f32 %v1217, %v1075
    %v1219 = vmul.f32 %v1218, %v1217
    %v1220 = vmul.f32 0.5, %v1219
    %v1221 = vsub.f32 1.5, %v1220
    %v1222 = vmul.f32 %v1217, %v1221
    %vm1223 = vweird.f32 %v1075
    %vm1224 = vweird.f32 %v1217
    %vm1225 = vmor %vm1223, %vm1224
    %v1226 = vsel %vm1225, %v1217, %v1222
    %v1227 = vrsqrt.pop %v1076
    %v1228 = vmul.f32 %v1227, %v1076
    %v1229 = vmul.f32 %v1228, %v1227
    %v1230 = vmul.f32 0.5, %v1229
    %v1231 = vsub.f32 1.5, %v1230
    %v1232 = vmul.f32 %v1227, %v1231
    %vm1233 = vweird.f32 %v1076
    %vm1234 = vweird.f32 %v1227
    %vm1235 = vmor %vm1233, %vm1234
    %v1236 = vsel %vm1235, %v1227, %v1232
    %v1237 = vmul.f32 %v981, %v1086
    %v1238 = vmul.f32 %v982, %v1096
    %v1239 = vmul.f32 %v983, %v1106
    %v1240 = vmul.f32 %v984, %v1116
    %v1241 = vmul.f32 %v985, %v1126
    %v1242 = vmul.f32 %v986, %v1136
    %v1243 = vmul.f32 %v987, %v1146
    %v1244 = vmul.f32 %v988, %v1156
    %v1245 = vmul.f32 %v989, %v1166
    %v1246 = vmul.f32 %v990, %v1176
    %v1247 = vmul.f32 %v991, %v1186
    %v1248 = vmul.f32 %v992, %v1196
    %v1249 = vmul.f32 %v993, %v1206
    %v1250 = vmul.f32 %v994, %v1216
    %v1251 = vmul.f32 %v995, %v1226
    %v1252 = vmul.f32 %v996, %v1236
    %v1254 = vperm.slane %v910, 0
    %v1256 = vmul.f32 %v1237, %v1254
    %v1257 = vmul.f32 %v1238, %v1254
    %v1258 = vmul.f32 %v1239, %v1254
    %v1259 = vmul.f32 %v1240, %v1254
    %v1260 = vmul.f32 %v1241, %v1254
    %v1261 = vmul.f32 %v1242, %v1254
    %v1262 = vmul.f32 %v1243, %v1254
    %v1263 = vmul.f32 %v1244, %v1254
    %v1264 = vmul.f32 %v1245, %v1254
    %v1265 = vmul.f32 %v1246, %v1254
    %v1266 = vmul.f32 %v1247, %v1254
    %v1267 = vmul.f32 %v1248, %v1254
    %v1268 = vmul.f32 %v1249, %v1254
    %v1269 = vmul.f32 %v1250, %v1254
    %v1270 = vmul.f32 %v1251, %v1254
    %v1271 = vmul.f32 %v1252, %v1254
    %v1273 = vperm.slane %v911, 0
    %v1275 = vadd.f32 %v1256, %v1273
    %v1276 = vadd.f32 %v1257, %v1273
    %v1277 = vadd.f32 %v1258, %v1273
    %v1278 = vadd.f32 %v1259, %v1273
    %v1279 = vadd.f32 %v1260, %v1273
    %v1280 = vadd.f32 %v1261, %v1273
    %v1281 = vadd.f32 %v1262, %v1273
    %v1282 = vadd.f32 %v1263, %v1273
    %v1283 = vadd.f32 %v1264, %v1273
    %v1284 = vadd.f32 %v1265, %v1273
    %v1285 = vadd.f32 %v1266, %v1273
    %v1286 = vadd.f32 %v1267, %v1273
    %v1287 = vadd.f32 %v1268, %v1273
    %v1288 = vadd.f32 %v1269, %v1273
    %v1289 = vadd.f32 %v1270, %v1273
    %v1290 = vadd.f32 %v1271, %v1273
    %v1291 = vmax.f32 %v1275, 0.0
    %v1292 = vmax.f32 %v1276, 0.0
    %v1293 = vmax.f32 %v1277, 0.0
    %v1294 = vmax.f32 %v1278, 0.0
    %v1295 = vmax.f32 %v1279, 0.0
    %v1296 = vmax.f32 %v1280, 0.0
    %v1297 = vmax.f32 %v1281, 0.0
    %v1298 = vmax.f32 %v1282, 0.0
    %v1299 = vmax.f32 %v1283, 0.0
    %v1300 = vmax.f32 %v1284, 0.0
    %v1301 = vmax.f32 %v1285, 0.0
    %v1302 = vmax.f32 %v1286, 0.0
    %v1303 = vmax.f32 %v1287, 0.0
    %v1304 = vmax.f32 %v1288, 0.0
    %v1305 = vmax.f32 %v1289, 0.0
    %v1306 = vmax.f32 %v1290, 0.0
    %v1307 = vpack.c.bf16 %v1291, %v1291
    %v1308 = vpack.c.bf16 %v1292, %v1292
    %v1309 = vpack.c.bf16 %v1293, %v1293
    %v1310 = vpack.c.bf16 %v1294, %v1294
    %v1311 = vpack.c.bf16 %v1295, %v1295
    %v1312 = vpack.c.bf16 %v1296, %v1296
    %v1313 = vpack.c.bf16 %v1297, %v1297
    %v1314 = vpack.c.bf16 %v1298, %v1298
    %v1315 = vpack.c.bf16 %v1299, %v1299
    %v1316 = vpack.c.bf16 %v1300, %v1300
    %v1317 = vpack.c.bf16 %v1301, %v1301
    %v1318 = vpack.c.bf16 %v1302, %v1302
    %v1319 = vpack.c.bf16 %v1303, %v1303
    %v1320 = vpack.c.bf16 %v1304, %v1304
    %v1321 = vpack.c.bf16 %v1305, %v1305
    %v1322 = vpack.c.bf16 %v1306, %v1306
    %1323 = vst [vmem:[%s12] sm:$0xf] %v1307
    %1324 = vst [vmem:[%s12 + $0x4] sm:$0xf] %v1308
    %1325 = vst [vmem:[%s12 + $0x8] sm:$0xf] %v1309
    %1326 = vst [vmem:[%s12 + $0xc] sm:$0xf] %v1310
    %1327 = vst [vmem:[%s12 + $0x10] sm:$0xf] %v1311
    %1328 = vst [vmem:[%s12 + $0x14] sm:$0xf] %v1312
    %1329 = vst [vmem:[%s12 + $0x18] sm:$0xf] %v1313
    %1330 = vst [vmem:[%s12 + $0x1c] sm:$0xf] %v1314
    %1331 = vst [vmem:[%s12 + $0x20] sm:$0xf] %v1315
    %1332 = vst [vmem:[%s12 + $0x24] sm:$0xf] %v1316
    %1333 = vst [vmem:[%s12 + $0x28] sm:$0xf] %v1317
    %1334 = vst [vmem:[%s12 + $0x2c] sm:$0xf] %v1318
    %1335 = vst [vmem:[%s12 + $0x30] sm:$0xf] %v1319
    %1336 = vst [vmem:[%s12 + $0x34] sm:$0xf] %v1320
    %1337 = vst [vmem:[%s12 + $0x38] sm:$0xf] %v1321
    %1338 = vst [vmem:[%s12 + $0x3c] sm:$0xf] %v1322
  $region53: #{uniegnn_forward.2} parent=0 // pred_fallthru
    _
  // Predicated region
  $region54: #{uniegnn_forward.2} parent=0 // pred_check
    _
  $region55: #{uniegnn_forward.2} parent=0 // pred_check_branch
    %1340 = sbr.rel (0) target = $region57
  $region56: #{uniegnn_forward.2} parent=0 // pred_region
    _
  $region57: #{uniegnn_forward.2} parent=0 // pred_fallthru
    _
  // Predicated region
  $region58: #{uniegnn_forward.2} parent=0 // pred_check
    _
  $region59: #{uniegnn_forward.2} parent=0 // pred_check_branch
    %1342 = sbr.rel (0) target = $region61
  $region60: #{uniegnn_forward.2} parent=0 // pred_region
    _
  $region61: #{uniegnn_forward.2} parent=0 // pred_fallthru
    _
  // Predicated region
  $region62: #{uniegnn_forward.2} parent=0 // pred_check
    _
  $region63: #{uniegnn_forward.2} parent=0 // pred_check_branch
    %1344 = sbr.rel (0) target = $region65
  $region64: #{uniegnn_forward.2} parent=0 // pred_region
    _
  $region65: #{uniegnn_forward.2} parent=0 // pred_fallthru
    _
  // Predicated region
  $region66: #{uniegnn_forward.2} parent=0 // pred_check
    _
  $region67: #{uniegnn_forward.2} parent=0 // pred_check_branch
    %1346 = sbr.rel (0) target = $region69
  $region68: #{uniegnn_forward.2} parent=0 // pred_region
    _
  $region69: #{uniegnn_forward.2} parent=0 // pred_fallthru
    _

// kernel: uniegnn_forward.3
$region0: #{uniegnn_forward.3}
  #allocation0 [shape = 'u32[]', space=smem, size = 0x4, offset = 0x4, fixed_abs, tag = 'smem constant byte address 0x4 - core index']
  #allocation1 [shape = 'u32[72,128]{1,0:T(1,128)}', space=vmem, size = 0x9000, scoped, tag = 'internal scratch']
  #allocation2 [shape = 'f32[128,128]{1,0:T(8,128)}', space=vmem, size = 0x10000, scoped, tag = 'scratch operand']
  #allocation3 [shape = 'f32[128,128]{1,0:T(8,128)}', space=vmem, size = 0x10000, scoped, tag = 'scratch operand']
  %s0 = inlined_call_operand.vmem [shape: bf16[128,128], index: 0, kind: input, shape index: {}]
  %s1 = inlined_call_operand.vmem [shape: s8[128,128], index: 1, kind: input, shape index: {}]
  %s2 = inlined_call_operand.vmem [shape: bf16[128,128], index: 2, kind: input, shape index: {}]
  %s3 = inlined_call_operand.vmem [shape: f32[128,1], index: 3, kind: input, shape index: {}]
  %s4 = inlined_call_operand.vmem [shape: bf16[128,128], index: 4, kind: input, shape index: {}]
  %s5 = inlined_call_operand.vmem [shape: bf16[128,128], index: 5, kind: input, shape index: {}]
  %s6 = inlined_call_operand.vmem [shape: f32[1,128], index: 6, kind: input, shape index: {}]
  %s7 = inlined_call_operand.vmem [shape: f32[1,128], index: 7, kind: input, shape index: {}]
  %s8 = inlined_call_operand.vmem [shape: f32[1,128], index: 8, kind: input, shape index: {}]
  %s9 = inlined_call_operand.vmem [shape: bf16[128,128], index: 9, kind: output, shape index: {}]
  %s10 = sld [smem:[#allocation0]]
  $region54: #{uniegnn_forward.3} parent=0
    _
  %s12 = ssub.s32 1, %s10
  %s13 = scalar_select 0, %s12, %s10
  // Predicated region
  $region2: #{uniegnn_forward.3} parent=0 // pred_check
    _
  $region3: #{uniegnn_forward.3} parent=0 // pred_check_branch
    %15 = sbr.rel (0) target = $region5
  $region4: #{uniegnn_forward.3} parent=0 // pred_region
    _
  $region5: #{uniegnn_forward.3} parent=0 // pred_fallthru
    _
  // Predicated region
  $region6: #{uniegnn_forward.3} parent=0 // pred_check
    _
  $region7: #{uniegnn_forward.3} parent=0 // pred_check_branch
    %17 = sbr.rel (0) target = $region9
  $region8: #{uniegnn_forward.3} parent=0 // pred_region
    _
  $region9: #{uniegnn_forward.3} parent=0 // pred_fallthru
    _
  // Predicated region
  $region10: #{uniegnn_forward.3} parent=0 // pred_check
    _
  $region11: #{uniegnn_forward.3} parent=0 // pred_check_branch
    %19 = sbr.rel (0) target = $region13
  $region12: #{uniegnn_forward.3} parent=0 // pred_region
    _
  $region13: #{uniegnn_forward.3} parent=0 // pred_fallthru
    _
  // Predicated region
  $region14: #{uniegnn_forward.3} parent=0 // pred_check
    _
  $region15: #{uniegnn_forward.3} parent=0 // pred_check_branch
    %21 = sbr.rel (0) target = $region17
  $region16: #{uniegnn_forward.3} parent=0 // pred_region
    _
  $region17: #{uniegnn_forward.3} parent=0 // pred_fallthru
    _
  // Predicated region
  $region18: #{uniegnn_forward.3} parent=0 // pred_check
    _
  $region19: #{uniegnn_forward.3} parent=0 // pred_check_branch
    %23 = sbr.rel (0) target = $region21
  $region20: #{uniegnn_forward.3} parent=0 // pred_region
    _
  $region21: #{uniegnn_forward.3} parent=0 // pred_fallthru
    _
  // Predicated region
  $region22: #{uniegnn_forward.3} parent=0 // pred_check
    _
  $region23: #{uniegnn_forward.3} parent=0 // pred_check_branch
    %25 = sbr.rel (0) target = $region25
  $region24: #{uniegnn_forward.3} parent=0 // pred_region
    _
  $region25: #{uniegnn_forward.3} parent=0 // pred_fallthru
    _
  // Predicated region
  $region26: #{uniegnn_forward.3} parent=0 // pred_check
    _
  $region27: #{uniegnn_forward.3} parent=0 // pred_check_branch
    %27 = sbr.rel (0) target = $region29
  $region28: #{uniegnn_forward.3} parent=0 // pred_region
    _
  $region29: #{uniegnn_forward.3} parent=0 // pred_fallthru
    _
  // Predicated region
  $region30: #{uniegnn_forward.3} parent=0 // pred_check
    _
  $region31: #{uniegnn_forward.3} parent=0 // pred_check_branch
    %29 = sbr.rel (0) target = $region33
  $region32: #{uniegnn_forward.3} parent=0 // pred_region
    _
  $region33: #{uniegnn_forward.3} parent=0 // pred_fallthru
    _
  // Predicated region
  $region34: #{uniegnn_forward.3} parent=0 // pred_check
    _
  $region35: #{uniegnn_forward.3} parent=0 // pred_check_branch
    %31 = sbr.rel (0) target = $region37
  $region36: #{uniegnn_forward.3} parent=0 // pred_region
    _
  $region37: #{uniegnn_forward.3} parent=0 // pred_fallthru
    _
  %p32 = scmp.eq.s32.totalorder 0, 0
  // Predicated region
  $region38: #{uniegnn_forward.3} parent=0 // pred_check
    %p33 = pneg %p32
  $region39: #{uniegnn_forward.3} parent=0 // pred_check_branch
    %35 = sbr.rel (%p33) target = $region41
  $region40: #{uniegnn_forward.3} parent=0 // pred_region
    %36 = vst [vmem:[#allocation2] sm:$0xff] 0.0
    %37 = vst [vmem:[#allocation2 + $0x8] sm:$0xff] 0.0
    %38 = vst [vmem:[#allocation2 + $0x10] sm:$0xff] 0.0
    %39 = vst [vmem:[#allocation2 + $0x18] sm:$0xff] 0.0
    %40 = vst [vmem:[#allocation2 + $0x20] sm:$0xff] 0.0
    %41 = vst [vmem:[#allocation2 + $0x28] sm:$0xff] 0.0
    %42 = vst [vmem:[#allocation2 + $0x30] sm:$0xff] 0.0
    %43 = vst [vmem:[#allocation2 + $0x38] sm:$0xff] 0.0
    %44 = vst [vmem:[#allocation2 + $0x40] sm:$0xff] 0.0
    %45 = vst [vmem:[#allocation2 + $0x48] sm:$0xff] 0.0
    %46 = vst [vmem:[#allocation2 + $0x50] sm:$0xff] 0.0
    %47 = vst [vmem:[#allocation2 + $0x58] sm:$0xff] 0.0
    %48 = vst [vmem:[#allocation2 + $0x60] sm:$0xff] 0.0
    %49 = vst [vmem:[#allocation2 + $0x68] sm:$0xff] 0.0
    %50 = vst [vmem:[#allocation2 + $0x70] sm:$0xff] 0.0
    %51 = vst [vmem:[#allocation2 + $0x78] sm:$0xff] 0.0
    %v52 = vld [vmem:[%s2] sm:$0xf]
    %v53 = vld [vmem:[%s2 + $0x4] sm:$0xf]
    %v54 = vld [vmem:[%s2 + $0x8] sm:$0xf]
    %v55 = vld [vmem:[%s2 + $0xc] sm:$0xf]
    %v56 = vld [vmem:[%s2 + $0x10] sm:$0xf]
    %v57 = vld [vmem:[%s2 + $0x14] sm:$0xf]
    %v58 = vld [vmem:[%s2 + $0x18] sm:$0xf]
    %v59 = vld [vmem:[%s2 + $0x1c] sm:$0xf]
    %v60 = vld [vmem:[%s2 + $0x20] sm:$0xf]
    %v61 = vld [vmem:[%s2 + $0x24] sm:$0xf]
    %v62 = vld [vmem:[%s2 + $0x28] sm:$0xf]
    %v63 = vld [vmem:[%s2 + $0x2c] sm:$0xf]
    %v64 = vld [vmem:[%s2 + $0x30] sm:$0xf]
    %v65 = vld [vmem:[%s2 + $0x34] sm:$0xf]
    %v66 = vld [vmem:[%s2 + $0x38] sm:$0xf]
    %v67 = vld [vmem:[%s2 + $0x3c] sm:$0xf]
    %v68 = vld [vmem:[%s4] sm:$0xf]
    %v69 = vld [vmem:[%s4 + $0x4] sm:$0xf]
    %v70 = vld [vmem:[%s4 + $0x8] sm:$0xf]
    %v71 = vld [vmem:[%s4 + $0xc] sm:$0xf]
    %v72 = vld [vmem:[%s4 + $0x10] sm:$0xf]
    %v73 = vld [vmem:[%s4 + $0x14] sm:$0xf]
    %v74 = vld [vmem:[%s4 + $0x18] sm:$0xf]
    %v75 = vld [vmem:[%s4 + $0x1c] sm:$0xf]
    %v76 = vld [vmem:[%s4 + $0x20] sm:$0xf]
    %v77 = vld [vmem:[%s4 + $0x24] sm:$0xf]
    %v78 = vld [vmem:[%s4 + $0x28] sm:$0xf]
    %v79 = vld [vmem:[%s4 + $0x2c] sm:$0xf]
    %v80 = vld [vmem:[%s4 + $0x30] sm:$0xf]
    %v81 = vld [vmem:[%s4 + $0x34] sm:$0xf]
    %v82 = vld [vmem:[%s4 + $0x38] sm:$0xf]
    %v83 = vld [vmem:[%s4 + $0x3c] sm:$0xf]
    %v84 = vld [vmem:[%s6] sm:$0x1]
    %v86 = vperm.slane %v84, 0
    %v104 = vunpack.c.l.b16 %v52
    %v105 = vunpack.c.l.b16 %v53
    %v106 = vunpack.c.l.b16 %v54
    %v107 = vunpack.c.l.b16 %v55
    %v108 = vunpack.c.l.b16 %v56
    %v109 = vunpack.c.l.b16 %v57
    %v110 = vunpack.c.l.b16 %v58
    %v111 = vunpack.c.l.b16 %v59
    %v112 = vunpack.c.l.b16 %v60
    %v113 = vunpack.c.l.b16 %v61
    %v114 = vunpack.c.l.b16 %v62
    %v115 = vunpack.c.l.b16 %v63
    %v116 = vunpack.c.l.b16 %v64
    %v117 = vunpack.c.l.b16 %v65
    %v118 = vunpack.c.l.b16 %v66
    %v119 = vunpack.c.l.b16 %v67
    %v120 = vpack.c.b16 %v105, %v104
    %v121 = vpack.c.b16 %v107, %v106
    %v122 = vpack.c.b16 %v109, %v108
    %v123 = vpack.c.b16 %v111, %v110
    %v124 = vpack.c.b16 %v113, %v112
    %v125 = vpack.c.b16 %v115, %v114
    %v126 = vpack.c.b16 %v117, %v116
    %v127 = vpack.c.b16 %v119, %v118
    %v152 = vunpack.c.l.b16 %v68
    %v153 = vunpack.c.l.b16 %v69
    %v154 = vunpack.c.l.b16 %v70
    %v155 = vunpack.c.l.b16 %v71
    %v156 = vunpack.c.l.b16 %v72
    %v157 = vunpack.c.l.b16 %v73
    %v158 = vunpack.c.l.b16 %v74
    %v159 = vunpack.c.l.b16 %v75
    %v160 = vunpack.c.l.b16 %v76
    %v161 = vunpack.c.l.b16 %v77
    %v162 = vunpack.c.l.b16 %v78
    %v163 = vunpack.c.l.b16 %v79
    %v164 = vunpack.c.l.b16 %v80
    %v165 = vunpack.c.l.b16 %v81
    %v166 = vunpack.c.l.b16 %v82
    %v167 = vunpack.c.l.b16 %v83
    %v168 = vpack.c.b16 %v153, %v152
    %v169 = vpack.c.b16 %v155, %v154
    %v170 = vpack.c.b16 %v157, %v156
    %v171 = vpack.c.b16 %v159, %v158
    %v172 = vpack.c.b16 %v161, %v160
    %v173 = vpack.c.b16 %v163, %v162
    %v174 = vpack.c.b16 %v165, %v164
    %v175 = vpack.c.b16 %v167, %v166
    %184 = vmatpush.bf16.msra.mxu0 %v175
    %185 = vmatpush.bf16.msra.mxu0 %v174
    %186 = vmatpush.bf16.msra.mxu0 %v173
    %187 = vmatpush.bf16.msra.mxu0 %v172
    %188 = vmatpush.bf16.msra.mxu0 %v171
    %189 = vmatpush.bf16.msra.mxu0 %v170
    %190 = vmatpush.bf16.msra.mxu0 %v169
    %191 = vmatpush.bf16.msra.mxu0 %v168
    %192 = vmatmul.bf16.gmra.mxu0 %v120
    %v193 = vpop.f32.mrf.mxu0
    %v194 = vadd.f32 %v86, %v193
    %v195 = vpop.f32.mrf.mxu0
    %v196 = vadd.f32 %v86, %v195
    %197 = vmatmul.bf16.gmra.mxu0 %v121
    %v198 = vpop.f32.mrf.mxu0
    %v199 = vadd.f32 %v86, %v198
    %v200 = vpop.f32.mrf.mxu0
    %v201 = vadd.f32 %v86, %v200
    %202 = vmatmul.bf16.gmra.mxu0 %v122
    %v203 = vpop.f32.mrf.mxu0
    %v204 = vadd.f32 %v86, %v203
    %v205 = vpop.f32.mrf.mxu0
    %v206 = vadd.f32 %v86, %v205
    %207 = vmatmul.bf16.gmra.mxu0 %v123
    %v208 = vpop.f32.mrf.mxu0
    %v209 = vadd.f32 %v86, %v208
    %v210 = vpop.f32.mrf.mxu0
    %v211 = vadd.f32 %v86, %v210
    %212 = vmatmul.bf16.gmra.mxu0 %v124
    %v213 = vpop.f32.mrf.mxu0
    %v214 = vadd.f32 %v86, %v213
    %v215 = vpop.f32.mrf.mxu0
    %v216 = vadd.f32 %v86, %v215
    %217 = vmatmul.bf16.gmra.mxu0 %v125
    %v218 = vpop.f32.mrf.mxu0
    %v219 = vadd.f32 %v86, %v218
    %v220 = vpop.f32.mrf.mxu0
    %v221 = vadd.f32 %v86, %v220
    %222 = vmatmul.bf16.gmra.mxu0 %v126
    %v223 = vpop.f32.mrf.mxu0
    %v224 = vadd.f32 %v86, %v223
    %v225 = vpop.f32.mrf.mxu0
    %v226 = vadd.f32 %v86, %v225
    %227 = vmatmul.bf16.gmra.mxu0 %v127
    %v228 = vpop.f32.mrf.mxu0
    %v229 = vadd.f32 %v86, %v228
    %v230 = vpop.f32.mrf.mxu0
    %v231 = vadd.f32 %v86, %v230
    %232 = vdwg.mxu0
    %233 = vst [vmem:[#allocation3] sm:$0xff] %v194
    %234 = vst [vmem:[#allocation3 + $0x8] sm:$0xff] %v196
    %235 = vst [vmem:[#allocation3 + $0x10] sm:$0xff] %v199
    %236 = vst [vmem:[#allocation3 + $0x18] sm:$0xff] %v201
    %237 = vst [vmem:[#allocation3 + $0x20] sm:$0xff] %v204
    %238 = vst [vmem:[#allocation3 + $0x28] sm:$0xff] %v206
    %239 = vst [vmem:[#allocation3 + $0x30] sm:$0xff] %v209
    %240 = vst [vmem:[#allocation3 + $0x38] sm:$0xff] %v211
    %241 = vst [vmem:[#allocation3 + $0x40] sm:$0xff] %v214
    %242 = vst [vmem:[#allocation3 + $0x48] sm:$0xff] %v216
    %243 = vst [vmem:[#allocation3 + $0x50] sm:$0xff] %v219
    %244 = vst [vmem:[#allocation3 + $0x58] sm:$0xff] %v221
    %245 = vst [vmem:[#allocation3 + $0x60] sm:$0xff] %v224
    %246 = vst [vmem:[#allocation3 + $0x68] sm:$0xff] %v226
    %247 = vst [vmem:[#allocation3 + $0x70] sm:$0xff] %v229
    %248 = vst [vmem:[#allocation3 + $0x78] sm:$0xff] %v231
  $region41: #{uniegnn_forward.3} parent=0 // pred_fallthru
    _
  %v249 = vld [vmem:[#allocation2] sm:$0xff]
  %v250 = vld [vmem:[#allocation2 + $0x8] sm:$0xff]
  %v251 = vld [vmem:[#allocation2 + $0x10] sm:$0xff]
  %v252 = vld [vmem:[#allocation2 + $0x18] sm:$0xff]
  %v253 = vld [vmem:[#allocation2 + $0x20] sm:$0xff]
  %v254 = vld [vmem:[#allocation2 + $0x28] sm:$0xff]
  %v255 = vld [vmem:[#allocation2 + $0x30] sm:$0xff]
  %v256 = vld [vmem:[#allocation2 + $0x38] sm:$0xff]
  %v257 = vld [vmem:[#allocation2 + $0x40] sm:$0xff]
  %v258 = vld [vmem:[#allocation2 + $0x48] sm:$0xff]
  %v259 = vld [vmem:[#allocation2 + $0x50] sm:$0xff]
  %v260 = vld [vmem:[#allocation2 + $0x58] sm:$0xff]
  %v261 = vld [vmem:[#allocation2 + $0x60] sm:$0xff]
  %v262 = vld [vmem:[#allocation2 + $0x68] sm:$0xff]
  %v263 = vld [vmem:[#allocation2 + $0x70] sm:$0xff]
  %v264 = vld [vmem:[#allocation2 + $0x78] sm:$0xff]
  %v265 = vld [vmem:[%s1] sm:$0xff]
  %v266 = vld [vmem:[%s1 + $0x8] sm:$0xff]
  %v267 = vld [vmem:[%s1 + $0x10] sm:$0xff]
  %v268 = vld [vmem:[%s1 + $0x18] sm:$0xff]
  %v269 = vunpack.c.0.s8 %v265
  %v270 = vunpack.c.1.s8 %v265
  %v271 = vunpack.c.2.s8 %v265
  %v272 = vunpack.c.3.s8 %v265
  %v273 = vunpack.c.0.s8 %v266
  %v274 = vunpack.c.1.s8 %v266
  %v275 = vunpack.c.2.s8 %v266
  %v276 = vunpack.c.3.s8 %v266
  %v277 = vunpack.c.0.s8 %v267
  %v278 = vunpack.c.1.s8 %v267
  %v279 = vunpack.c.2.s8 %v267
  %v280 = vunpack.c.3.s8 %v267
  %v281 = vunpack.c.0.s8 %v268
  %v282 = vunpack.c.1.s8 %v268
  %v283 = vunpack.c.2.s8 %v268
  %v284 = vunpack.c.3.s8 %v268
  %v285 = vcvt.s32.f32 %v269
  %v286 = vcvt.s32.f32 %v270
  %v287 = vcvt.s32.f32 %v271
  %v288 = vcvt.s32.f32 %v272
  %v289 = vcvt.s32.f32 %v273
  %v290 = vcvt.s32.f32 %v274
  %v291 = vcvt.s32.f32 %v275
  %v292 = vcvt.s32.f32 %v276
  %v293 = vcvt.s32.f32 %v277
  %v294 = vcvt.s32.f32 %v278
  %v295 = vcvt.s32.f32 %v279
  %v296 = vcvt.s32.f32 %v280
  %v297 = vcvt.s32.f32 %v281
  %v298 = vcvt.s32.f32 %v282
  %v299 = vcvt.s32.f32 %v283
  %v300 = vcvt.s32.f32 %v284
  %v301 = vpack.c.bf16 %v286, %v285
  %v302 = vpack.c.bf16 %v288, %v287
  %v303 = vpack.c.bf16 %v290, %v289
  %v304 = vpack.c.bf16 %v292, %v291
  %v305 = vpack.c.bf16 %v294, %v293
  %v306 = vpack.c.bf16 %v296, %v295
  %v307 = vpack.c.bf16 %v298, %v297
  %v308 = vpack.c.bf16 %v300, %v299
  %v309 = vld [vmem:[%s0] sm:$0xf]
  %v310 = vld [vmem:[%s0 + $0x4] sm:$0xf]
  %v311 = vld [vmem:[%s0 + $0x8] sm:$0xf]
  %v312 = vld [vmem:[%s0 + $0xc] sm:$0xf]
  %v313 = vld [vmem:[%s0 + $0x10] sm:$0xf]
  %v314 = vld [vmem:[%s0 + $0x14] sm:$0xf]
  %v315 = vld [vmem:[%s0 + $0x18] sm:$0xf]
  %v316 = vld [vmem:[%s0 + $0x1c] sm:$0xf]
  %v317 = vld [vmem:[%s0 + $0x20] sm:$0xf]
  %v318 = vld [vmem:[%s0 + $0x24] sm:$0xf]
  %v319 = vld [vmem:[%s0 + $0x28] sm:$0xf]
  %v320 = vld [vmem:[%s0 + $0x2c] sm:$0xf]
  %v321 = vld [vmem:[%s0 + $0x30] sm:$0xf]
  %v322 = vld [vmem:[%s0 + $0x34] sm:$0xf]
  %v323 = vld [vmem:[%s0 + $0x38] sm:$0xf]
  %v324 = vld [vmem:[%s0 + $0x3c] sm:$0xf]
  %v341 = vunpack.c.l.b16 %v309
  %v342 = vunpack.c.l.b16 %v310
  %v343 = vunpack.c.l.b16 %v311
  %v344 = vunpack.c.l.b16 %v312
  %v345 = vunpack.c.l.b16 %v313
  %v346 = vunpack.c.l.b16 %v314
  %v347 = vunpack.c.l.b16 %v315
  %v348 = vunpack.c.l.b16 %v316
  %v349 = vunpack.c.l.b16 %v317
  %v350 = vunpack.c.l.b16 %v318
  %v351 = vunpack.c.l.b16 %v319
  %v352 = vunpack.c.l.b16 %v320
  %v353 = vunpack.c.l.b16 %v321
  %v354 = vunpack.c.l.b16 %v322
  %v355 = vunpack.c.l.b16 %v323
  %v356 = vunpack.c.l.b16 %v324
  %v357 = vpack.c.b16 %v342, %v341
  %v358 = vpack.c.b16 %v344, %v343
  %v359 = vpack.c.b16 %v346, %v345
  %v360 = vpack.c.b16 %v348, %v347
  %v361 = vpack.c.b16 %v350, %v349
  %v362 = vpack.c.b16 %v352, %v351
  %v363 = vpack.c.b16 %v354, %v353
  %v364 = vpack.c.b16 %v356, %v355
  %373 = vmatpush.bf16.msra.mxu0 %v364
  %374 = vmatpush.bf16.msra.mxu0 %v363
  %375 = vmatpush.bf16.msra.mxu0 %v362
  %376 = vmatpush.bf16.msra.mxu0 %v361
  %377 = vmatpush.bf16.msra.mxu0 %v360
  %378 = vmatpush.bf16.msra.mxu0 %v359
  %379 = vmatpush.bf16.msra.mxu0 %v358
  %380 = vmatpush.bf16.msra.mxu0 %v357
  %381 = vmatmul.bf16.gmra.mxu0 %v301
  %v382 = vpop.f32.mrf.mxu0
  %v383 = vadd.f32 0.0, %v382
  %v384 = vpop.f32.mrf.mxu0
  %v385 = vadd.f32 0.0, %v384
  %386 = vmatmul.bf16.gmra.mxu0 %v302
  %v387 = vpop.f32.mrf.mxu0
  %v388 = vadd.f32 0.0, %v387
  %v389 = vpop.f32.mrf.mxu0
  %v390 = vadd.f32 0.0, %v389
  %391 = vmatmul.bf16.gmra.mxu0 %v303
  %v392 = vpop.f32.mrf.mxu0
  %v393 = vadd.f32 0.0, %v392
  %v394 = vpop.f32.mrf.mxu0
  %v395 = vadd.f32 0.0, %v394
  %396 = vmatmul.bf16.gmra.mxu0 %v304
  %v397 = vpop.f32.mrf.mxu0
  %v398 = vadd.f32 0.0, %v397
  %v399 = vpop.f32.mrf.mxu0
  %v400 = vadd.f32 0.0, %v399
  %401 = vmatmul.bf16.gmra.mxu0 %v305
  %v402 = vpop.f32.mrf.mxu0
  %v403 = vadd.f32 0.0, %v402
  %v404 = vpop.f32.mrf.mxu0
  %v405 = vadd.f32 0.0, %v404
  %406 = vmatmul.bf16.gmra.mxu0 %v306
  %v407 = vpop.f32.mrf.mxu0
  %v408 = vadd.f32 0.0, %v407
  %v409 = vpop.f32.mrf.mxu0
  %v410 = vadd.f32 0.0, %v409
  %411 = vmatmul.bf16.gmra.mxu0 %v307
  %v412 = vpop.f32.mrf.mxu0
  %v413 = vadd.f32 0.0, %v412
  %v414 = vpop.f32.mrf.mxu0
  %v415 = vadd.f32 0.0, %v414
  %416 = vmatmul.bf16.gmra.mxu0 %v308
  %v417 = vpop.f32.mrf.mxu0
  %v418 = vadd.f32 0.0, %v417
  %v419 = vpop.f32.mrf.mxu0
  %v420 = vadd.f32 0.0, %v419
  %421 = vdwg.mxu0
  %v422 = vadd.f32 %v249, %v383
  %v423 = vadd.f32 %v250, %v385
  %v424 = vadd.f32 %v251, %v388
  %v425 = vadd.f32 %v252, %v390
  %v426 = vadd.f32 %v253, %v393
  %v427 = vadd.f32 %v254, %v395
  %v428 = vadd.f32 %v255, %v398
  %v429 = vadd.f32 %v256, %v400
  %v430 = vadd.f32 %v257, %v403
  %v431 = vadd.f32 %v258, %v405
  %v432 = vadd.f32 %v259, %v408
  %v433 = vadd.f32 %v260, %v410
  %v434 = vadd.f32 %v261, %v413
  %v435 = vadd.f32 %v262, %v415
  %v436 = vadd.f32 %v263, %v418
  %v437 = vadd.f32 %v264, %v420
  %438 = vst [vmem:[#allocation2] sm:$0xff] %v422
  %439 = vst [vmem:[#allocation2 + $0x8] sm:$0xff] %v423
  %440 = vst [vmem:[#allocation2 + $0x10] sm:$0xff] %v424
  %441 = vst [vmem:[#allocation2 + $0x18] sm:$0xff] %v425
  %442 = vst [vmem:[#allocation2 + $0x20] sm:$0xff] %v426
  %443 = vst [vmem:[#allocation2 + $0x28] sm:$0xff] %v427
  %444 = vst [vmem:[#allocation2 + $0x30] sm:$0xff] %v428
  %445 = vst [vmem:[#allocation2 + $0x38] sm:$0xff] %v429
  %446 = vst [vmem:[#allocation2 + $0x40] sm:$0xff] %v430
  %447 = vst [vmem:[#allocation2 + $0x48] sm:$0xff] %v431
  %448 = vst [vmem:[#allocation2 + $0x50] sm:$0xff] %v432
  %449 = vst [vmem:[#allocation2 + $0x58] sm:$0xff] %v433
  %450 = vst [vmem:[#allocation2 + $0x60] sm:$0xff] %v434
  %451 = vst [vmem:[#allocation2 + $0x68] sm:$0xff] %v435
  %452 = vst [vmem:[#allocation2 + $0x70] sm:$0xff] %v436
  %453 = vst [vmem:[#allocation2 + $0x78] sm:$0xff] %v437
  // Predicated region
  $region42: #{uniegnn_forward.3} parent=0 // pred_check
    %p454 = pneg %p32
  $region43: #{uniegnn_forward.3} parent=0 // pred_check_branch
    %456 = sbr.rel (%p454) target = $region45
  $region44: #{uniegnn_forward.3} parent=0 // pred_region
    %v457 = vld [vmem:[#allocation2] sm:$0xff]
    %v458 = vld [vmem:[#allocation2 + $0x8] sm:$0xff]
    %v459 = vld [vmem:[#allocation2 + $0x10] sm:$0xff]
    %v460 = vld [vmem:[#allocation2 + $0x18] sm:$0xff]
    %v461 = vld [vmem:[#allocation2 + $0x20] sm:$0xff]
    %v462 = vld [vmem:[#allocation2 + $0x28] sm:$0xff]
    %v463 = vld [vmem:[#allocation2 + $0x30] sm:$0xff]
    %v464 = vld [vmem:[#allocation2 + $0x38] sm:$0xff]
    %v465 = vld [vmem:[#allocation2 + $0x40] sm:$0xff]
    %v466 = vld [vmem:[#allocation2 + $0x48] sm:$0xff]
    %v467 = vld [vmem:[#allocation2 + $0x50] sm:$0xff]
    %v468 = vld [vmem:[#allocation2 + $0x58] sm:$0xff]
    %v469 = vld [vmem:[#allocation2 + $0x60] sm:$0xff]
    %v470 = vld [vmem:[#allocation2 + $0x68] sm:$0xff]
    %v471 = vld [vmem:[#allocation2 + $0x70] sm:$0xff]
    %v472 = vld [vmem:[#allocation2 + $0x78] sm:$0xff]
    %v473 = vld [vmem:[%s3] sm:$0xff]
    %v474 = vld [vmem:[%s3 + $0x8] sm:$0xff]
    %v475 = vld [vmem:[%s3 + $0x10] sm:$0xff]
    %v476 = vld [vmem:[%s3 + $0x18] sm:$0xff]
    %v477 = vld [vmem:[%s3 + $0x20] sm:$0xff]
    %v478 = vld [vmem:[%s3 + $0x28] sm:$0xff]
    %v479 = vld [vmem:[%s3 + $0x30] sm:$0xff]
    %v480 = vld [vmem:[%s3 + $0x38] sm:$0xff]
    %v481 = vld [vmem:[%s3 + $0x40] sm:$0xff]
    %v482 = vld [vmem:[%s3 + $0x48] sm:$0xff]
    %v483 = vld [vmem:[%s3 + $0x50] sm:$0xff]
    %v484 = vld [vmem:[%s3 + $0x58] sm:$0xff]
    %v485 = vld [vmem:[%s3 + $0x60] sm:$0xff]
    %v486 = vld [vmem:[%s3 + $0x68] sm:$0xff]
    %v487 = vld [vmem:[%s3 + $0x70] sm:$0xff]
    %v488 = vld [vmem:[%s3 + $0x78] sm:$0xff]
    %490 = vset.pattern.permute.xlu0 0
    %491 = vperm.xlu0 %490, %v473
    %v492 = vpop.permute.xlu0 %491
    %495 = vset.pattern.permute.xlu0 0
    %496 = vperm.xlu0 %495, %v474
    %v497 = vpop.permute.xlu0 %496
    %500 = vset.pattern.permute.xlu0 0
    %501 = vperm.xlu0 %500, %v475
    %v502 = vpop.permute.xlu0 %501
    %505 = vset.pattern.permute.xlu0 0
    %506 = vperm.xlu0 %505, %v476
    %v507 = vpop.permute.xlu0 %506
    %510 = vset.pattern.permute.xlu0 0
    %511 = vperm.xlu0 %510, %v477
    %v512 = vpop.permute.xlu0 %511
    %515 = vset.pattern.permute.xlu0 0
    %516 = vperm.xlu0 %515, %v478
    %v517 = vpop.permute.xlu0 %516
    %520 = vset.pattern.permute.xlu0 0
    %521 = vperm.xlu0 %520, %v479
    %v522 = vpop.permute.xlu0 %521
    %525 = vset.pattern.permute.xlu0 0
    %526 = vperm.xlu0 %525, %v480
    %v527 = vpop.permute.xlu0 %526
    %530 = vset.pattern.permute.xlu0 0
    %531 = vperm.xlu0 %530, %v481
    %v532 = vpop.permute.xlu0 %531
    %535 = vset.pattern.permute.xlu0 0
    %536 = vperm.xlu0 %535, %v482
    %v537 = vpop.permute.xlu0 %536
    %540 = vset.pattern.permute.xlu0 0
    %541 = vperm.xlu0 %540, %v483
    %v542 = vpop.permute.xlu0 %541
    %545 = vset.pattern.permute.xlu0 0
    %546 = vperm.xlu0 %545, %v484
    %v547 = vpop.permute.xlu0 %546
    %550 = vset.pattern.permute.xlu0 0
    %551 = vperm.xlu0 %550, %v485
    %v552 = vpop.permute.xlu0 %551
    %555 = vset.pattern.permute.xlu0 0
    %556 = vperm.xlu0 %555, %v486
    %v557 = vpop.permute.xlu0 %556
    %560 = vset.pattern.permute.xlu0 0
    %561 = vperm.xlu0 %560, %v487
    %v562 = vpop.permute.xlu0 %561
    %565 = vset.pattern.permute.xlu0 0
    %566 = vperm.xlu0 %565, %v488
    %v567 = vpop.permute.xlu0 %566
    %v569 = vmul.f32 %v457, %v492
    %v570 = vmul.f32 %v458, %v497
    %v571 = vmul.f32 %v459, %v502
    %v572 = vmul.f32 %v460, %v507
    %v573 = vmul.f32 %v461, %v512
    %v574 = vmul.f32 %v462, %v517
    %v575 = vmul.f32 %v463, %v522
    %v576 = vmul.f32 %v464, %v527
    %v577 = vmul.f32 %v465, %v532
    %v578 = vmul.f32 %v466, %v537
    %v579 = vmul.f32 %v467, %v542
    %v580 = vmul.f32 %v468, %v547
    %v581 = vmul.f32 %v469, %v552
    %v582 = vmul.f32 %v470, %v557
    %v583 = vmul.f32 %v471, %v562
    %v584 = vmul.f32 %v472, %v567
    %v585 = vpack.c.bf16 %v570, %v569
    %v586 = vpack.c.bf16 %v572, %v571
    %v587 = vpack.c.bf16 %v574, %v573
    %v588 = vpack.c.bf16 %v576, %v575
    %v589 = vpack.c.bf16 %v578, %v577
    %v590 = vpack.c.bf16 %v580, %v579
    %v591 = vpack.c.bf16 %v582, %v581
    %v592 = vpack.c.bf16 %v584, %v583
    %v593 = vld [vmem:[#allocation3] sm:$0xff]
    %v594 = vld [vmem:[#allocation3 + $0x8] sm:$0xff]
    %v595 = vld [vmem:[#allocation3 + $0x10] sm:$0xff]
    %v596 = vld [vmem:[#allocation3 + $0x18] sm:$0xff]
    %v597 = vld [vmem:[#allocation3 + $0x20] sm:$0xff]
    %v598 = vld [vmem:[#allocation3 + $0x28] sm:$0xff]
    %v599 = vld [vmem:[#allocation3 + $0x30] sm:$0xff]
    %v600 = vld [vmem:[#allocation3 + $0x38] sm:$0xff]
    %v601 = vld [vmem:[#allocation3 + $0x40] sm:$0xff]
    %v602 = vld [vmem:[#allocation3 + $0x48] sm:$0xff]
    %v603 = vld [vmem:[#allocation3 + $0x50] sm:$0xff]
    %v604 = vld [vmem:[#allocation3 + $0x58] sm:$0xff]
    %v605 = vld [vmem:[#allocation3 + $0x60] sm:$0xff]
    %v606 = vld [vmem:[#allocation3 + $0x68] sm:$0xff]
    %v607 = vld [vmem:[#allocation3 + $0x70] sm:$0xff]
    %v608 = vld [vmem:[#allocation3 + $0x78] sm:$0xff]
    %v609 = vld [vmem:[%s5] sm:$0xf]
    %v610 = vld [vmem:[%s5 + $0x4] sm:$0xf]
    %v611 = vld [vmem:[%s5 + $0x8] sm:$0xf]
    %v612 = vld [vmem:[%s5 + $0xc] sm:$0xf]
    %v613 = vld [vmem:[%s5 + $0x10] sm:$0xf]
    %v614 = vld [vmem:[%s5 + $0x14] sm:$0xf]
    %v615 = vld [vmem:[%s5 + $0x18] sm:$0xf]
    %v616 = vld [vmem:[%s5 + $0x1c] sm:$0xf]
    %v617 = vld [vmem:[%s5 + $0x20] sm:$0xf]
    %v618 = vld [vmem:[%s5 + $0x24] sm:$0xf]
    %v619 = vld [vmem:[%s5 + $0x28] sm:$0xf]
    %v620 = vld [vmem:[%s5 + $0x2c] sm:$0xf]
    %v621 = vld [vmem:[%s5 + $0x30] sm:$0xf]
    %v622 = vld [vmem:[%s5 + $0x34] sm:$0xf]
    %v623 = vld [vmem:[%s5 + $0x38] sm:$0xf]
    %v624 = vld [vmem:[%s5 + $0x3c] sm:$0xf]
    %v641 = vunpack.c.l.b16 %v609
    %v642 = vunpack.c.l.b16 %v610
    %v643 = vunpack.c.l.b16 %v611
    %v644 = vunpack.c.l.b16 %v612
    %v645 = vunpack.c.l.b16 %v613
    %v646 = vunpack.c.l.b16 %v614
    %v647 = vunpack.c.l.b16 %v615
    %v648 = vunpack.c.l.b16 %v616
    %v649 = vunpack.c.l.b16 %v617
    %v650 = vunpack.c.l.b16 %v618
    %v651 = vunpack.c.l.b16 %v619
    %v652 = vunpack.c.l.b16 %v620
    %v653 = vunpack.c.l.b16 %v621
    %v654 = vunpack.c.l.b16 %v622
    %v655 = vunpack.c.l.b16 %v623
    %v656 = vunpack.c.l.b16 %v624
    %v657 = vpack.c.b16 %v642, %v641
    %v658 = vpack.c.b16 %v644, %v643
    %v659 = vpack.c.b16 %v646, %v645
    %v660 = vpack.c.b16 %v648, %v647
    %v661 = vpack.c.b16 %v650, %v649
    %v662 = vpack.c.b16 %v652, %v651
    %v663 = vpack.c.b16 %v654, %v653
    %v664 = vpack.c.b16 %v656, %v655
    %673 = vmatpush.bf16.msra.mxu0 %v664
    %674 = vmatpush.bf16.msra.mxu0 %v663
    %675 = vmatpush.bf16.msra.mxu0 %v662
    %676 = vmatpush.bf16.msra.mxu0 %v661
    %677 = vmatpush.bf16.msra.mxu0 %v660
    %678 = vmatpush.bf16.msra.mxu0 %v659
    %679 = vmatpush.bf16.msra.mxu0 %v658
    %680 = vmatpush.bf16.msra.mxu0 %v657
    %681 = vmatmul.bf16.gmra.mxu0 %v585
    %v682 = vpop.f32.mrf.mxu0
    %v683 = vadd.f32 0.0, %v682
    %v684 = vpop.f32.mrf.mxu0
    %v685 = vadd.f32 0.0, %v684
    %686 = vmatmul.bf16.gmra.mxu0 %v586
    %v687 = vpop.f32.mrf.mxu0
    %v688 = vadd.f32 0.0, %v687
    %v689 = vpop.f32.mrf.mxu0
    %v690 = vadd.f32 0.0, %v689
    %691 = vmatmul.bf16.gmra.mxu0 %v587
    %v692 = vpop.f32.mrf.mxu0
    %v693 = vadd.f32 0.0, %v692
    %v694 = vpop.f32.mrf.mxu0
    %v695 = vadd.f32 0.0, %v694
    %696 = vmatmul.bf16.gmra.mxu0 %v588
    %v697 = vpop.f32.mrf.mxu0
    %v698 = vadd.f32 0.0, %v697
    %v699 = vpop.f32.mrf.mxu0
    %v700 = vadd.f32 0.0, %v699
    %701 = vmatmul.bf16.gmra.mxu0 %v589
    %v702 = vpop.f32.mrf.mxu0
    %v703 = vadd.f32 0.0, %v702
    %v704 = vpop.f32.mrf.mxu0
    %v705 = vadd.f32 0.0, %v704
    %706 = vmatmul.bf16.gmra.mxu0 %v590
    %v707 = vpop.f32.mrf.mxu0
    %v708 = vadd.f32 0.0, %v707
    %v709 = vpop.f32.mrf.mxu0
    %v710 = vadd.f32 0.0, %v709
    %711 = vmatmul.bf16.gmra.mxu0 %v591
    %v712 = vpop.f32.mrf.mxu0
    %v713 = vadd.f32 0.0, %v712
    %v714 = vpop.f32.mrf.mxu0
    %v715 = vadd.f32 0.0, %v714
    %716 = vmatmul.bf16.gmra.mxu0 %v592
    %v717 = vpop.f32.mrf.mxu0
    %v718 = vadd.f32 0.0, %v717
    %v719 = vpop.f32.mrf.mxu0
    %v720 = vadd.f32 0.0, %v719
    %721 = vdwg.mxu0
    %v722 = vadd.f32 %v593, %v683
    %v723 = vadd.f32 %v594, %v685
    %v724 = vadd.f32 %v595, %v688
    %v725 = vadd.f32 %v596, %v690
    %v726 = vadd.f32 %v597, %v693
    %v727 = vadd.f32 %v598, %v695
    %v728 = vadd.f32 %v599, %v698
    %v729 = vadd.f32 %v600, %v700
    %v730 = vadd.f32 %v601, %v703
    %v731 = vadd.f32 %v602, %v705
    %v732 = vadd.f32 %v603, %v708
    %v733 = vadd.f32 %v604, %v710
    %v734 = vadd.f32 %v605, %v713
    %v735 = vadd.f32 %v606, %v715
    %v736 = vadd.f32 %v607, %v718
    %v737 = vadd.f32 %v608, %v720
    %v738 = vld [vmem:[%s7] sm:$0x1]
    %v739 = vld [vmem:[%s8] sm:$0x1]
    %740 = vadd.xlane.f32.xlu0 %v722
    %v741 = vpop.xlane.xlu0 %740
    %742 = vadd.xlane.f32.xlu0 %v723
    %v743 = vpop.xlane.xlu0 %742
    %744 = vadd.xlane.f32.xlu0 %v724
    %v745 = vpop.xlane.xlu0 %744
    %746 = vadd.xlane.f32.xlu0 %v725
    %v747 = vpop.xlane.xlu0 %746
    %748 = vadd.xlane.f32.xlu0 %v726
    %v749 = vpop.xlane.xlu0 %748
    %750 = vadd.xlane.f32.xlu0 %v727
    %v751 = vpop.xlane.xlu0 %750
    %752 = vadd.xlane.f32.xlu0 %v728
    %v753 = vpop.xlane.xlu0 %752
    %754 = vadd.xlane.f32.xlu0 %v729
    %v755 = vpop.xlane.xlu0 %754
    %756 = vadd.xlane.f32.xlu0 %v730
    %v757 = vpop.xlane.xlu0 %756
    %758 = vadd.xlane.f32.xlu0 %v731
    %v759 = vpop.xlane.xlu0 %758
    %760 = vadd.xlane.f32.xlu0 %v732
    %v761 = vpop.xlane.xlu0 %760
    %762 = vadd.xlane.f32.xlu0 %v733
    %v763 = vpop.xlane.xlu0 %762
    %764 = vadd.xlane.f32.xlu0 %v734
    %v765 = vpop.xlane.xlu0 %764
    %766 = vadd.xlane.f32.xlu0 %v735
    %v767 = vpop.xlane.xlu0 %766
    %768 = vadd.xlane.f32.xlu0 %v736
    %v769 = vpop.xlane.xlu0 %768
    %770 = vadd.xlane.f32.xlu0 %v737
    %v771 = vpop.xlane.xlu0 %770
    %v772 = vmul.f32 %v741, 0.03125
    %v773 = vmul.f32 %v743, 0.03125
    %v774 = vmul.f32 %v745, 0.03125
    %v775 = vmul.f32 %v747, 0.03125
    %v776 = vmul.f32 %v749, 0.03125
    %v777 = vmul.f32 %v751, 0.03125
    %v778 = vmul.f32 %v753, 0.03125
    %v779 = vmul.f32 %v755, 0.03125
    %v780 = vmul.f32 %v757, 0.03125
    %v781 = vmul.f32 %v759, 0.03125
    %v782 = vmul.f32 %v761, 0.03125
    %v783 = vmul.f32 %v763, 0.03125
    %v784 = vmul.f32 %v765, 0.03125
    %v785 = vmul.f32 %v767, 0.03125
    %v786 = vmul.f32 %v769, 0.03125
    %v787 = vmul.f32 %v771, 0.03125
    %v788 = vsub.f32 %v722, %v772
    %v789 = vsub.f32 %v723, %v773
    %v790 = vsub.f32 %v724, %v774
    %v791 = vsub.f32 %v725, %v775
    %v792 = vsub.f32 %v726, %v776
    %v793 = vsub.f32 %v727, %v777
    %v794 = vsub.f32 %v728, %v778
    %v795 = vsub.f32 %v729, %v779
    %v796 = vsub.f32 %v730, %v780
    %v797 = vsub.f32 %v731, %v781
    %v798 = vsub.f32 %v732, %v782
    %v799 = vsub.f32 %v733, %v783
    %v800 = vsub.f32 %v734, %v784
    %v801 = vsub.f32 %v735, %v785
    %v802 = vsub.f32 %v736, %v786
    %v803 = vsub.f32 %v737, %v787
    %v804 = vlaneseq
    %v805 = vand.u32 %v804, 127
    %vm806 = vcmp.lt.s32.totalorder %v805, 32
    %v807 = vsel %vm806, 1, 0
    %vm808 = vcmp.eq.s32.totalorder %v807, 1
    %v809 = vsel %vm808, %v788, 0.0
    %v810 = vsel %vm808, %v789, 0.0
    %v811 = vsel %vm808, %v790, 0.0
    %v812 = vsel %vm808, %v791, 0.0
    %v813 = vsel %vm808, %v792, 0.0
    %v814 = vsel %vm808, %v793, 0.0
    %v815 = vsel %vm808, %v794, 0.0
    %v816 = vsel %vm808, %v795, 0.0
    %v817 = vsel %vm808, %v796, 0.0
    %v818 = vsel %vm808, %v797, 0.0
    %v819 = vsel %vm808, %v798, 0.0
    %v820 = vsel %vm808, %v799, 0.0
    %v821 = vsel %vm808, %v800, 0.0
    %v822 = vsel %vm808, %v801, 0.0
    %v823 = vsel %vm808, %v802, 0.0
    %v824 = vsel %vm808, %v803, 0.0
    %v825 = vmul.f32 %v809, %v809
    %v826 = vmul.f32 %v810, %v810
    %v827 = vmul.f32 %v811, %v811
    %v828 = vmul.f32 %v812, %v812
    %v829 = vmul.f32 %v813, %v813
    %v830 = vmul.f32 %v814, %v814
    %v831 = vmul.f32 %v815, %v815
    %v832 = vmul.f32 %v816, %v816
    %v833 = vmul.f32 %v817, %v817
    %v834 = vmul.f32 %v818, %v818
    %v835 = vmul.f32 %v819, %v819
    %v836 = vmul.f32 %v820, %v820
    %v837 = vmul.f32 %v821, %v821
    %v838 = vmul.f32 %v822, %v822
    %v839 = vmul.f32 %v823, %v823
    %v840 = vmul.f32 %v824, %v824
    %841 = vadd.xlane.f32.xlu0 %v825
    %v842 = vpop.xlane.xlu0 %841
    %843 = vadd.xlane.f32.xlu0 %v826
    %v844 = vpop.xlane.xlu0 %843
    %845 = vadd.xlane.f32.xlu0 %v827
    %v846 = vpop.xlane.xlu0 %845
    %847 = vadd.xlane.f32.xlu0 %v828
    %v848 = vpop.xlane.xlu0 %847
    %849 = vadd.xlane.f32.xlu0 %v829
    %v850 = vpop.xlane.xlu0 %849
    %851 = vadd.xlane.f32.xlu0 %v830
    %v852 = vpop.xlane.xlu0 %851
    %853 = vadd.xlane.f32.xlu0 %v831
    %v854 = vpop.xlane.xlu0 %853
    %855 = vadd.xlane.f32.xlu0 %v832
    %v856 = vpop.xlane.xlu0 %855
    %857 = vadd.xlane.f32.xlu0 %v833
    %v858 = vpop.xlane.xlu0 %857
    %859 = vadd.xlane.f32.xlu0 %v834
    %v860 = vpop.xlane.xlu0 %859
    %861 = vadd.xlane.f32.xlu0 %v835
    %v862 = vpop.xlane.xlu0 %861
    %863 = vadd.xlane.f32.xlu0 %v836
    %v864 = vpop.xlane.xlu0 %863
    %865 = vadd.xlane.f32.xlu0 %v837
    %v866 = vpop.xlane.xlu0 %865
    %867 = vadd.xlane.f32.xlu0 %v838
    %v868 = vpop.xlane.xlu0 %867
    %869 = vadd.xlane.f32.xlu0 %v839
    %v870 = vpop.xlane.xlu0 %869
    %871 = vadd.xlane.f32.xlu0 %v840
    %v872 = vpop.xlane.xlu0 %871
    %v873 = vmul.f32 %v842, 0.03125
    %v874 = vmul.f32 %v844, 0.03125
    %v875 = vmul.f32 %v846, 0.03125
    %v876 = vmul.f32 %v848, 0.03125
    %v877 = vmul.f32 %v850, 0.03125
    %v878 = vmul.f32 %v852, 0.03125
    %v879 = vmul.f32 %v854, 0.03125
    %v880 = vmul.f32 %v856, 0.03125
    %v881 = vmul.f32 %v858, 0.03125
    %v882 = vmul.f32 %v860, 0.03125
    %v883 = vmul.f32 %v862, 0.03125
    %v884 = vmul.f32 %v864, 0.03125
    %v885 = vmul.f32 %v866, 0.03125
    %v886 = vmul.f32 %v868, 0.03125
    %v887 = vmul.f32 %v870, 0.03125
    %v888 = vmul.f32 %v872, 0.03125
    %v889 = vadd.f32 %v873, 1e-05
    %v890 = vadd.f32 %v874, 1e-05
    %v891 = vadd.f32 %v875, 1e-05
    %v892 = vadd.f32 %v876, 1e-05
    %v893 = vadd.f32 %v877, 1e-05
    %v894 = vadd.f32 %v878, 1e-05
    %v895 = vadd.f32 %v879, 1e-05
    %v896 = vadd.f32 %v880, 1e-05
    %v897 = vadd.f32 %v881, 1e-05
    %v898 = vadd.f32 %v882, 1e-05
    %v899 = vadd.f32 %v883, 1e-05
    %v900 = vadd.f32 %v884, 1e-05
    %v901 = vadd.f32 %v885, 1e-05
    %v902 = vadd.f32 %v886, 1e-05
    %v903 = vadd.f32 %v887, 1e-05
    %v904 = vadd.f32 %v888, 1e-05
    %v905 = vrsqrt.pop %v889
    %v906 = vmul.f32 %v905, %v889
    %v907 = vmul.f32 %v906, %v905
    %v908 = vmul.f32 0.5, %v907
    %v909 = vsub.f32 1.5, %v908
    %v910 = vmul.f32 %v905, %v909
    %vm911 = vweird.f32 %v889
    %vm912 = vweird.f32 %v905
    %vm913 = vmor %vm911, %vm912
    %v914 = vsel %vm913, %v905, %v910
    %v915 = vrsqrt.pop %v890
    %v916 = vmul.f32 %v915, %v890
    %v917 = vmul.f32 %v916, %v915
    %v918 = vmul.f32 0.5, %v917
    %v919 = vsub.f32 1.5, %v918
    %v920 = vmul.f32 %v915, %v919
    %vm921 = vweird.f32 %v890
    %vm922 = vweird.f32 %v915
    %vm923 = vmor %vm921, %vm922
    %v924 = vsel %vm923, %v915, %v920
    %v925 = vrsqrt.pop %v891
    %v926 = vmul.f32 %v925, %v891
    %v927 = vmul.f32 %v926, %v925
    %v928 = vmul.f32 0.5, %v927
    %v929 = vsub.f32 1.5, %v928
    %v930 = vmul.f32 %v925, %v929
    %vm931 = vweird.f32 %v891
    %vm932 = vweird.f32 %v925
    %vm933 = vmor %vm931, %vm932
    %v934 = vsel %vm933, %v925, %v930
    %v935 = vrsqrt.pop %v892
    %v936 = vmul.f32 %v935, %v892
    %v937 = vmul.f32 %v936, %v935
    %v938 = vmul.f32 0.5, %v937
    %v939 = vsub.f32 1.5, %v938
    %v940 = vmul.f32 %v935, %v939
    %vm941 = vweird.f32 %v892
    %vm942 = vweird.f32 %v935
    %vm943 = vmor %vm941, %vm942
    %v944 = vsel %vm943, %v935, %v940
    %v945 = vrsqrt.pop %v893
    %v946 = vmul.f32 %v945, %v893
    %v947 = vmul.f32 %v946, %v945
    %v948 = vmul.f32 0.5, %v947
    %v949 = vsub.f32 1.5, %v948
    %v950 = vmul.f32 %v945, %v949
    %vm951 = vweird.f32 %v893
    %vm952 = vweird.f32 %v945
    %vm953 = vmor %vm951, %vm952
    %v954 = vsel %vm953, %v945, %v950
    %v955 = vrsqrt.pop %v894
    %v956 = vmul.f32 %v955, %v894
    %v957 = vmul.f32 %v956, %v955
    %v958 = vmul.f32 0.5, %v957
    %v959 = vsub.f32 1.5, %v958
    %v960 = vmul.f32 %v955, %v959
    %vm961 = vweird.f32 %v894
    %vm962 = vweird.f32 %v955
    %vm963 = vmor %vm961, %vm962
    %v964 = vsel %vm963, %v955, %v960
    %v965 = vrsqrt.pop %v895
    %v966 = vmul.f32 %v965, %v895
    %v967 = vmul.f32 %v966, %v965
    %v968 = vmul.f32 0.5, %v967
    %v969 = vsub.f32 1.5, %v968
    %v970 = vmul.f32 %v965, %v969
    %vm971 = vweird.f32 %v895
    %vm972 = vweird.f32 %v965
    %vm973 = vmor %vm971, %vm972
    %v974 = vsel %vm973, %v965, %v970
    %v975 = vrsqrt.pop %v896
    %v976 = vmul.f32 %v975, %v896
    %v977 = vmul.f32 %v976, %v975
    %v978 = vmul.f32 0.5, %v977
    %v979 = vsub.f32 1.5, %v978
    %v980 = vmul.f32 %v975, %v979
    %vm981 = vweird.f32 %v896
    %vm982 = vweird.f32 %v975
    %vm983 = vmor %vm981, %vm982
    %v984 = vsel %vm983, %v975, %v980
    %v985 = vrsqrt.pop %v897
    %v986 = vmul.f32 %v985, %v897
    %v987 = vmul.f32 %v986, %v985
    %v988 = vmul.f32 0.5, %v987
    %v989 = vsub.f32 1.5, %v988
    %v990 = vmul.f32 %v985, %v989
    %vm991 = vweird.f32 %v897
    %vm992 = vweird.f32 %v985
    %vm993 = vmor %vm991, %vm992
    %v994 = vsel %vm993, %v985, %v990
    %v995 = vrsqrt.pop %v898
    %v996 = vmul.f32 %v995, %v898
    %v997 = vmul.f32 %v996, %v995
    %v998 = vmul.f32 0.5, %v997
    %v999 = vsub.f32 1.5, %v998
    %v1000 = vmul.f32 %v995, %v999
    %vm1001 = vweird.f32 %v898
    %vm1002 = vweird.f32 %v995
    %vm1003 = vmor %vm1001, %vm1002
    %v1004 = vsel %vm1003, %v995, %v1000
    %v1005 = vrsqrt.pop %v899
    %v1006 = vmul.f32 %v1005, %v899
    %v1007 = vmul.f32 %v1006, %v1005
    %v1008 = vmul.f32 0.5, %v1007
    %v1009 = vsub.f32 1.5, %v1008
    %v1010 = vmul.f32 %v1005, %v1009
    %vm1011 = vweird.f32 %v899
    %vm1012 = vweird.f32 %v1005
    %vm1013 = vmor %vm1011, %vm1012
    %v1014 = vsel %vm1013, %v1005, %v1010
    %v1015 = vrsqrt.pop %v900
    %v1016 = vmul.f32 %v1015, %v900
    %v1017 = vmul.f32 %v1016, %v1015
    %v1018 = vmul.f32 0.5, %v1017
    %v1019 = vsub.f32 1.5, %v1018
    %v1020 = vmul.f32 %v1015, %v1019
    %vm1021 = vweird.f32 %v900
    %vm1022 = vweird.f32 %v1015
    %vm1023 = vmor %vm1021, %vm1022
    %v1024 = vsel %vm1023, %v1015, %v1020
    %v1025 = vrsqrt.pop %v901
    %v1026 = vmul.f32 %v1025, %v901
    %v1027 = vmul.f32 %v1026, %v1025
    %v1028 = vmul.f32 0.5, %v1027
    %v1029 = vsub.f32 1.5, %v1028
    %v1030 = vmul.f32 %v1025, %v1029
    %vm1031 = vweird.f32 %v901
    %vm1032 = vweird.f32 %v1025
    %vm1033 = vmor %vm1031, %vm1032
    %v1034 = vsel %vm1033, %v1025, %v1030
    %v1035 = vrsqrt.pop %v902
    %v1036 = vmul.f32 %v1035, %v902
    %v1037 = vmul.f32 %v1036, %v1035
    %v1038 = vmul.f32 0.5, %v1037
    %v1039 = vsub.f32 1.5, %v1038
    %v1040 = vmul.f32 %v1035, %v1039
    %vm1041 = vweird.f32 %v902
    %vm1042 = vweird.f32 %v1035
    %vm1043 = vmor %vm1041, %vm1042
    %v1044 = vsel %vm1043, %v1035, %v1040
    %v1045 = vrsqrt.pop %v903
    %v1046 = vmul.f32 %v1045, %v903
    %v1047 = vmul.f32 %v1046, %v1045
    %v1048 = vmul.f32 0.5, %v1047
    %v1049 = vsub.f32 1.5, %v1048
    %v1050 = vmul.f32 %v1045, %v1049
    %vm1051 = vweird.f32 %v903
    %vm1052 = vweird.f32 %v1045
    %vm1053 = vmor %vm1051, %vm1052
    %v1054 = vsel %vm1053, %v1045, %v1050
    %v1055 = vrsqrt.pop %v904
    %v1056 = vmul.f32 %v1055, %v904
    %v1057 = vmul.f32 %v1056, %v1055
    %v1058 = vmul.f32 0.5, %v1057
    %v1059 = vsub.f32 1.5, %v1058
    %v1060 = vmul.f32 %v1055, %v1059
    %vm1061 = vweird.f32 %v904
    %vm1062 = vweird.f32 %v1055
    %vm1063 = vmor %vm1061, %vm1062
    %v1064 = vsel %vm1063, %v1055, %v1060
    %v1065 = vmul.f32 %v809, %v914
    %v1066 = vmul.f32 %v810, %v924
    %v1067 = vmul.f32 %v811, %v934
    %v1068 = vmul.f32 %v812, %v944
    %v1069 = vmul.f32 %v813, %v954
    %v1070 = vmul.f32 %v814, %v964
    %v1071 = vmul.f32 %v815, %v974
    %v1072 = vmul.f32 %v816, %v984
    %v1073 = vmul.f32 %v817, %v994
    %v1074 = vmul.f32 %v818, %v1004
    %v1075 = vmul.f32 %v819, %v1014
    %v1076 = vmul.f32 %v820, %v1024
    %v1077 = vmul.f32 %v821, %v1034
    %v1078 = vmul.f32 %v822, %v1044
    %v1079 = vmul.f32 %v823, %v1054
    %v1080 = vmul.f32 %v824, %v1064
    %v1082 = vperm.slane %v738, 0
    %v1084 = vmul.f32 %v1065, %v1082
    %v1085 = vmul.f32 %v1066, %v1082
    %v1086 = vmul.f32 %v1067, %v1082
    %v1087 = vmul.f32 %v1068, %v1082
    %v1088 = vmul.f32 %v1069, %v1082
    %v1089 = vmul.f32 %v1070, %v1082
    %v1090 = vmul.f32 %v1071, %v1082
    %v1091 = vmul.f32 %v1072, %v1082
    %v1092 = vmul.f32 %v1073, %v1082
    %v1093 = vmul.f32 %v1074, %v1082
    %v1094 = vmul.f32 %v1075, %v1082
    %v1095 = vmul.f32 %v1076, %v1082
    %v1096 = vmul.f32 %v1077, %v1082
    %v1097 = vmul.f32 %v1078, %v1082
    %v1098 = vmul.f32 %v1079, %v1082
    %v1099 = vmul.f32 %v1080, %v1082
    %v1101 = vperm.slane %v739, 0
    %v1103 = vadd.f32 %v1084, %v1101
    %v1104 = vadd.f32 %v1085, %v1101
    %v1105 = vadd.f32 %v1086, %v1101
    %v1106 = vadd.f32 %v1087, %v1101
    %v1107 = vadd.f32 %v1088, %v1101
    %v1108 = vadd.f32 %v1089, %v1101
    %v1109 = vadd.f32 %v1090, %v1101
    %v1110 = vadd.f32 %v1091, %v1101
    %v1111 = vadd.f32 %v1092, %v1101
    %v1112 = vadd.f32 %v1093, %v1101
    %v1113 = vadd.f32 %v1094, %v1101
    %v1114 = vadd.f32 %v1095, %v1101
    %v1115 = vadd.f32 %v1096, %v1101
    %v1116 = vadd.f32 %v1097, %v1101
    %v1117 = vadd.f32 %v1098, %v1101
    %v1118 = vadd.f32 %v1099, %v1101
    %v1119 = vmax.f32 %v1103, 0.0
    %v1120 = vmax.f32 %v1104, 0.0
    %v1121 = vmax.f32 %v1105, 0.0
    %v1122 = vmax.f32 %v1106, 0.0
    %v1123 = vmax.f32 %v1107, 0.0
    %v1124 = vmax.f32 %v1108, 0.0
    %v1125 = vmax.f32 %v1109, 0.0
    %v1126 = vmax.f32 %v1110, 0.0
    %v1127 = vmax.f32 %v1111, 0.0
    %v1128 = vmax.f32 %v1112, 0.0
    %v1129 = vmax.f32 %v1113, 0.0
    %v1130 = vmax.f32 %v1114, 0.0
    %v1131 = vmax.f32 %v1115, 0.0
    %v1132 = vmax.f32 %v1116, 0.0
    %v1133 = vmax.f32 %v1117, 0.0
    %v1134 = vmax.f32 %v1118, 0.0
    %v1135 = vpack.c.bf16 %v1119, %v1119
    %v1136 = vpack.c.bf16 %v1120, %v1120
    %v1137 = vpack.c.bf16 %v1121, %v1121
    %v1138 = vpack.c.bf16 %v1122, %v1122
    %v1139 = vpack.c.bf16 %v1123, %v1123
    %v1140 = vpack.c.bf16 %v1124, %v1124
    %v1141 = vpack.c.bf16 %v1125, %v1125
    %v1142 = vpack.c.bf16 %v1126, %v1126
    %v1143 = vpack.c.bf16 %v1127, %v1127
    %v1144 = vpack.c.bf16 %v1128, %v1128
    %v1145 = vpack.c.bf16 %v1129, %v1129
    %v1146 = vpack.c.bf16 %v1130, %v1130
    %v1147 = vpack.c.bf16 %v1131, %v1131
    %v1148 = vpack.c.bf16 %v1132, %v1132
    %v1149 = vpack.c.bf16 %v1133, %v1133
    %v1150 = vpack.c.bf16 %v1134, %v1134
    %1151 = vst [vmem:[%s9] sm:$0xf] %v1135
    %1152 = vst [vmem:[%s9 + $0x4] sm:$0xf] %v1136
    %1153 = vst [vmem:[%s9 + $0x8] sm:$0xf] %v1137
    %1154 = vst [vmem:[%s9 + $0xc] sm:$0xf] %v1138
    %1155 = vst [vmem:[%s9 + $0x10] sm:$0xf] %v1139
    %1156 = vst [vmem:[%s9 + $0x14] sm:$0xf] %v1140
    %1157 = vst [vmem:[%s9 + $0x18] sm:$0xf] %v1141
    %1158 = vst [vmem:[%s9 + $0x1c] sm:$0xf] %v1142
    %1159 = vst [vmem:[%s9 + $0x20] sm:$0xf] %v1143
    %1160 = vst [vmem:[%s9 + $0x24] sm:$0xf] %v1144
    %1161 = vst [vmem:[%s9 + $0x28] sm:$0xf] %v1145
    %1162 = vst [vmem:[%s9 + $0x2c] sm:$0xf] %v1146
    %1163 = vst [vmem:[%s9 + $0x30] sm:$0xf] %v1147
    %1164 = vst [vmem:[%s9 + $0x34] sm:$0xf] %v1148
    %1165 = vst [vmem:[%s9 + $0x38] sm:$0xf] %v1149
    %1166 = vst [vmem:[%s9 + $0x3c] sm:$0xf] %v1150
  $region45: #{uniegnn_forward.3} parent=0 // pred_fallthru
    _
  // Predicated region
  $region46: #{uniegnn_forward.3} parent=0 // pred_check
    _
  $region47: #{uniegnn_forward.3} parent=0 // pred_check_branch
    %1168 = sbr.rel (0) target = $region49
  $region48: #{uniegnn_forward.3} parent=0 // pred_region
    _
  $region49: #{uniegnn_forward.3} parent=0 // pred_fallthru
    _
  // Predicated region
  $region50: #{uniegnn_forward.3} parent=0 // pred_check
    _
  $region51: #{uniegnn_forward.3} parent=0 // pred_check_branch
    %1170 = sbr.rel (0) target = $region53
  $region52: #{uniegnn_forward.3} parent=0 // pred_region
    _
  $region53: #{uniegnn_forward.3} parent=0 // pred_fallthru
    _

</llo_original>
